<compile_context>
chip_gen: v7x
topology: tpu7x:2x2x1
jax: 0.10.0
libtpu: 0.0.40
codegen_flags: <defaults>
</compile_context>

<pallas_src>
import functools

import numpy as np

import jax
import jax.numpy as jnp
from jax.experimental import pallas as pl
from jax.experimental.pallas import tpu as pltpu


# ----------------------------------------------------------------------------
# Kernel: batch on lanes; conv1 on the VPU, conv2/conv3/fc1 on the MXU (bf16).
# ----------------------------------------------------------------------------
def _waternet_kernel(x_ref, w1_ref, b1_ref, m2_ref, b2_ref, m3_ref, b3_ref,
                     fc1w_ref, fc1b_ref, fc2w_ref, fc2b_ref, out_ref,
                     *, depth1, hw_pad):
    f32 = jnp.float32
    bf16 = jnp.bfloat16
    D1 = depth1
    C = D1 + 2
    HWp = hw_pad

    # ---- conv1 (Conv3d 1->3, kernel (3,1,1)) + ReLU as scalar-broadcast VPU
    # MACs over lane-dense per-channel slabs (kron structure, no MXU work).
    xs = [x_ref[c * HWp:(c + 1) * HWp, :].astype(f32) for c in range(C)]
    slabs = []
    for o in range(3):                       # conv1 output channel
        w_k0 = w1_ref[3 * o + 0]             # f32 scalars from SMEM
        w_k1 = w1_ref[3 * o + 1]
        w_k2 = w1_ref[3 * o + 2]
        b_o = b1_ref[o]
        for d in range(D1):                  # output depth index
            z = w_k0 * xs[d] + w_k1 * xs[d + 1] + w_k2 * xs[d + 2] + b_o
            slabs.append(jnp.maximum(z, 0.0))
    # Feature order f = o*D1 + d (torch flatten order); f32 concat keeps the
    # 8-row tile alignment (HWp is a multiple of 16).
    y = jnp.concatenate(slabs, axis=0)       # (D2*HWp, TB) f32

    # ---- conv2 (+ folded eval-mode BN) on the MXU: bf16 operands, f32 acc.
    z2 = jnp.dot(m2_ref[...], y.astype(bf16),
                 preferred_element_type=f32) + b2_ref[...]
    h2 = jnp.maximum(z2, 0.0)                # (10*P2*P2, TB) f32

    # ---- conv3 + ReLU
    z3 = jnp.dot(m3_ref[...], h2.astype(bf16),
                 preferred_element_type=f32) + b3_ref[...]
    h3 = jnp.maximum(z3, 0.0)                # (45, TB) f32

    # ---- fc1 + sigmoid (exp and approx reciprocal both sit on the EUP slot)
    z4 = jnp.dot(fc1w_ref[...], h3.astype(bf16),
                 preferred_element_type=f32) + fc1b_ref[...]
    s = pl.reciprocal(1.0 + jnp.exp(-z4), approx=True)   # (9, TB) f32

    # ---- fc2: weighted sublane reduction (avoids a degenerate M=1 matmul)
    out_ref[...] = (jnp.sum(s * fc2w_ref[...], axis=0, keepdims=True)
                    + fc2b_ref[...])         # (1, TB) lane-dense


# ----------------------------------------------------------------------------
# Wrapper-side parameter repacking (plain JAX glue, folded into the jit).
# ----------------------------------------------------------------------------
def _round_up(n, m):
    return ((n + m - 1) // m) * m


def _build_layer_matrices(params, in_channels, patch_size):
    C = in_channels
    H = W = patch_size
    HW = H * W
    HWp = _round_up(HW, 16)                  # 16-row alignment for bf16 slabs
    D1 = C - 2
    D2 = 3 * D1
    eps = 1e-5
    f32 = jnp.float32
    bf16 = jnp.bfloat16

    # ---- conv1 weights/bias: tiny, kept as f32 scalars for the SMEM path.
    w1 = params["conv1_w"][:, 0, :, 0, 0].astype(f32).reshape(9)   # [3*o + k]
    b1 = params["conv1_b"].astype(f32)                             # (3,)

    # ---- BatchNorm3d(D2), eval mode -> per-D2-feature affine (folded below).
    inv_std = (params["bn_gamma"] / jnp.sqrt(params["bn_var"] + eps)).astype(f32)
    bn_shift = (params["bn_beta"] - params["bn_mean"] * inv_std).astype(f32)

    # ---- conv2 (Conv3d 1->10, kernel (D2,3,3), padding (0,pad,pad)) as a
    # dense (10*P2*P2, D2*HWp) matrix built against the HW-padded layout.
    pad = 1 if patch_size == 5 else 0
    P2 = H + 2 * pad - 2                     # = 5 for ps in {5, 7}
    T2 = np.zeros((P2, P2, 3, 3, H, W), np.float32)
    for p in range(P2):
        for q in range(P2):
            for kh in range(3):
                for kw in range(3):
                    hh = p + kh - pad
                    ww = q + kw - pad
                    if 0 <= hh < H and 0 <= ww < W:
                        T2[p, q, kh, kw, hh, ww] = 1.0
    M2_core = jnp.einsum("ockl,pqklhw->opqchw",
                         params["conv2_w"][:, 0].astype(f32), T2
                         ).reshape(10 * P2 * P2, D2, HW)
    # Fold the (linear, pre-conv2) BN affine into the matrix / bias (f32).
    b2v = (jnp.repeat(params["conv2_b"].astype(f32), P2 * P2)
           + jnp.einsum("fch,c->f", M2_core, bn_shift)).reshape(-1, 1)
    M2 = jnp.pad(M2_core * inv_std[None, :, None],
                 ((0, 0), (0, 0), (0, HWp - HW))
                 ).reshape(10 * P2 * P2, D2 * HWp).astype(bf16)

    # ---- conv3 (Conv3d 1->5, kernel (10,3,3)).
    P3 = P2 - 2                              # = 3
    T3 = np.zeros((P3, P3, 3, 3, P2, P2), np.float32)
    for r in range(P3):
        for s in range(P3):
            for kh in range(3):
                for kw in range(3):
                    T3[r, s, kh, kw, r + kh, s + kw] = 1.0
    M3 = jnp.einsum("ockl,rsklpq->orscpq",
                    params["conv3_w"][:, 0].astype(f32), T3
                    ).reshape(5 * P3 * P3, 10 * P2 * P2).astype(bf16)
    b3v = jnp.repeat(params["conv3_b"].astype(f32), P3 * P3).reshape(-1, 1)

    # ---- fc1 / fc2 (torch flatten order of (B,1,5,3,3): f = o*9 + r*3 + s).
    fc1w = params["fc1_w"].astype(bf16)                   # (9, 45)
    fc1b = params["fc1_b"].astype(f32).reshape(9, 1)
    fc2w = params["fc2_w"].astype(f32).reshape(9, 1)      # column vector
    fc2b = params["fc2_b"].astype(f32).reshape(1, 1)

    return (w1, b1, M2, b2v, M3, b3v, fc1w, fc1b, fc2w, fc2b), HWp


def _pick_batch_tile(batch):
    """Per-generation lane-tile (multiple of 256) that fits default scoped VMEM."""
    try:
        kind = jax.devices()[0].device_kind.lower()
    except Exception:  # pragma: no cover - defensive
        kind = ""
    b = _round_up(max(batch, 1), 256)
    if "v7" in kind:
        # Keep both TensorCores fed and respect 64 MiB/TC VMEM.
        cap = min(4096, _round_up(-(-b // 2), 256))
    elif "v6" in kind:
        cap = 4096            # fits the 32 MiB default scoped VMEM with bf16
    elif "v5" in kind:
        cap = 1024            # stay under the 16 MiB default scoped VMEM
    else:
        cap = 1024            # conservative default for unknown chips
    return min(cap, b)


def waternet_forward(x, params, patch_size, *, batch_tile=None):
    B, C, H, W = x.shape
    if patch_size not in (5, 7):
        raise ValueError("WaterNet only supports patch_size in {5, 7}.")
    if H != patch_size or W != patch_size:
        raise ValueError("spatial dims must equal patch_size")
    if C < 2:
        raise ValueError("in_channels should be >= 2 for WaterNet")

    f32 = jnp.float32
    bf16 = jnp.bfloat16
    HW = H * W
    weights, HWp = _build_layer_matrices(params, C, patch_size)
    w1, b1 = weights[0], weights[1]
    vmem_weights = weights[2:]

    if batch_tile is None:
        TB = _pick_batch_tile(B)
    else:
        assert batch_tile % 256 == 0, "batch_tile must be a multiple of 256"
        TB = batch_tile
    B_pad = _round_up(max(B, 1), TB)
    n_tiles = B_pad // TB

    # Fused cast -> pad -> transpose: cast to bf16 BEFORE the transpose so the
    # strided relayout copy moves half the bytes.
    # TODO(synk): accept x already in (C*HWp, B) layout upstream to drop this copy.
    xb = x.astype(bf16).reshape(B, C, HW)
    xb = jnp.pad(xb, ((0, B_pad - B), (0, 0), (0, HWp - HW)))
    xT = xb.transpose(1, 2, 0).reshape(C * HWp, B_pad)    # (C*HWp, B_pad) bf16

    def _full_spec(arr):
        return pl.BlockSpec(arr.shape, lambda i, _nd=arr.ndim: (0,) * _nd)

    smem_spec = pl.BlockSpec(memory_space=pltpu.MemorySpace.SMEM)
    in_specs = [pl.BlockSpec((C * HWp, TB), lambda i: (0, i))]   # batched input
    in_specs += [smem_spec, smem_spec]                           # conv1 w / b
    in_specs += [_full_spec(w) for w in vmem_weights]            # resident weights

    kernel = functools.partial(_waternet_kernel, depth1=C - 2, hw_pad=HWp)

    out = pl.pallas_call(
        kernel,
        out_shape=jax.ShapeDtypeStruct((1, B_pad), f32),
        grid=(n_tiles,),
        in_specs=in_specs,
        out_specs=pl.BlockSpec((1, TB), lambda i: (0, i)),
        compiler_params=pltpu.CompilerParams(
            dimension_semantics=("parallel",)),
    )(xT, w1, b1, *vmem_weights)

    return out[0, :B].reshape(B, 1)


# ----------------------------------------------------------------------------
# Deterministic synthetic parameters in PyTorch-native shapes.
# ----------------------------------------------------------------------------
def init_params(key, in_channels):
    D2 = (in_channels - 2) * 3
    ks = jax.random.split(key, 12)
    p = {}
    p["conv1_w"] = 0.2 * jax.random.normal(ks[0], (3, 1, 3, 1, 1), jnp.float32)
    p["conv1_b"] = 0.1 * jax.random.normal(ks[1], (3,), jnp.float32)
    p["bn_gamma"] = 1.0 + 0.1 * jax.random.normal(ks[2], (D2,), jnp.float32)
    p["bn_beta"] = 0.1 * jax.random.normal(ks[3], (D2,), jnp.float32)
    p["bn_mean"] = jnp.zeros((D2,), jnp.float32)
    p["bn_var"] = jnp.ones((D2,), jnp.float32)
    p["conv2_w"] = 0.2 * jax.random.normal(ks[4], (10, 1, D2, 3, 3), jnp.float32)
    p["conv2_b"] = 0.1 * jax.random.normal(ks[5], (10,), jnp.float32)
    p["conv3_w"] = 0.2 * jax.random.normal(ks[6], (5, 1, 10, 3, 3), jnp.float32)
    p["conv3_b"] = 0.1 * jax.random.normal(ks[7], (5,), jnp.float32)
    p["fc1_w"] = 0.2 * jax.random.normal(ks[8], (9, 45), jnp.float32)
    p["fc1_b"] = 0.1 * jax.random.normal(ks[9], (9,), jnp.float32)
    p["fc2_w"] = 0.2 * jax.random.normal(ks[10], (1, 9), jnp.float32)
    p["fc2_b"] = 0.1 * jax.random.normal(ks[11], (1,), jnp.float32)
    return p


# ----------------------------------------------------------------------------
# Plain-JAX reference of the torch forward (eval-mode BN), for validation.
# ----------------------------------------------------------------------------
def waternet_reference(x, params, patch_size):
    B, C, H, W = x.shape
    D2 = (C - 2) * 3
    eps = 1e-5
    dn = ("NCDHW", "OIDHW", "NCDHW")
    prec = jax.lax.Precision.HIGHEST

    h1 = jax.lax.conv_general_dilated(
        x[:, None], params["conv1_w"], (1, 1, 1), [(0, 0)] * 3,
        dimension_numbers=dn, precision=prec)
    h1 = jnp.maximum(h1 + params["conv1_b"].reshape(1, 3, 1, 1, 1), 0.0)
    y = h1.reshape(B, D2, H, W)

    inv_std = params["bn_gamma"] / jnp.sqrt(params["bn_var"] + eps)
    y = (y * inv_std[None, :, None, None]
         + (params["bn_beta"] - params["bn_mean"] * inv_std)[None, :, None, None])

    pad = 1 if patch_size == 5 else 0
    h2 = jax.lax.conv_general_dilated(
        y[:, None], params["conv2_w"], (1, 1, 1),
        [(0, 0), (pad, pad), (pad, pad)], dimension_numbers=dn, precision=prec)
    h2 = jnp.maximum(h2 + params["conv2_b"].reshape(1, 10, 1, 1, 1), 0.0)
    P2 = h2.shape[-1]
    h2 = h2.reshape(B, 10, P2, P2)

    h3 = jax.lax.conv_general_dilated(
        h2[:, None], params["conv3_w"], (1, 1, 1), [(0, 0)] * 3,
        dimension_numbers=dn, precision=prec)
    h3 = jnp.maximum(h3 + params["conv3_b"].reshape(1, 5, 1, 1, 1), 0.0)

    flat = h3.reshape(B, -1)                                  # (B, 45)
    z = flat @ params["fc1_w"].T + params["fc1_b"]
    s = jax.nn.sigmoid(z)
    return s @ params["fc2_w"].T + params["fc2_b"]


if __name__ == "__main__":
    IN_CHANNELS = 4
    PATCH_SIZE = 7
    BATCH = 2

    key = jax.random.PRNGKey(0)
    kx, kp = jax.random.split(key)
    x = jax.random.normal(kx, (BATCH, IN_CHANNELS, PATCH_SIZE, PATCH_SIZE),
                          jnp.float32)
    params = init_params(kp, IN_CHANNELS)

    fwd = jax.jit(functools.partial(waternet_forward, patch_size=PATCH_SIZE))
    out = fwd(x, params)
    jax.block_until_ready(out)
    assert out.shape == (BATCH, 1) and out.dtype == jnp.float32

    ref = waternet_reference(x, params, PATCH_SIZE)
    err = float(jnp.max(jnp.abs(out - ref)))
    # Tolerance loosened vs the pure-f32 version: conv2/conv3/fc1 use bf16 MXU
    # operands (f32 accumulation), which bounds the end-to-end error well
    # below this threshold for the unit-scale synthetic weights.
    assert err < 3e-2, f"kernel vs reference mismatch: max abs err = {err}"

    print("KERNEL_OK")
</pallas_src>

<mosaic_0001>
module attributes {stable_mosaic.version = 11 : i64} {
  func.func @_waternet_kernel(%arg0: i32, %arg1: memref<256x256xbf16, #tpu.memory_space<vmem>>, %arg2: memref<9xf32, #tpu.memory_space<smem>>, %arg3: memref<3xf32, #tpu.memory_space<smem>>, %arg4: memref<250x384xbf16, #tpu.memory_space<vmem>>, %arg5: memref<250x1xf32, #tpu.memory_space<vmem>>, %arg6: memref<45x250xbf16, #tpu.memory_space<vmem>>, %arg7: memref<45x1xf32, #tpu.memory_space<vmem>>, %arg8: memref<9x45xbf16, #tpu.memory_space<vmem>>, %arg9: memref<9x1xf32, #tpu.memory_space<vmem>>, %arg10: memref<9x1xf32, #tpu.memory_space<vmem>>, %arg11: memref<1x1xf32, #tpu.memory_space<vmem>>, %arg12: memref<1x256xf32, #tpu.memory_space<vmem>>) attributes {dimension_semantics = [#tpu.dimension_semantics<parallel>], iteration_bounds = array<i64: 1>, scalar_prefetch = 0 : i64, scratch_operands = 0 : i64, tpu.core_type = #tpu.core_type<tc>, window_params = [{transform_indices = @transform_0, window_bounds = array<i64: 256, 256>}, {transform_indices = @transform_1, window_bounds = array<i64: 9>}, {transform_indices = @transform_2, window_bounds = array<i64: 3>}, {pipeline_mode = #tpu.pipeline_mode<synchronous>, transform_indices = @transform_3, window_bounds = array<i64: 250, 384>}, {pipeline_mode = #tpu.pipeline_mode<synchronous>, transform_indices = @transform_4, window_bounds = array<i64: 250, 1>}, {pipeline_mode = #tpu.pipeline_mode<synchronous>, transform_indices = @transform_5, window_bounds = array<i64: 45, 250>}, {pipeline_mode = #tpu.pipeline_mode<synchronous>, transform_indices = @transform_6, window_bounds = array<i64: 45, 1>}, {pipeline_mode = #tpu.pipeline_mode<synchronous>, transform_indices = @transform_7, window_bounds = array<i64: 9, 45>}, {pipeline_mode = #tpu.pipeline_mode<synchronous>, transform_indices = @transform_8, window_bounds = array<i64: 9, 1>}, {pipeline_mode = #tpu.pipeline_mode<synchronous>, transform_indices = @transform_9, window_bounds = array<i64: 9, 1>}, {pipeline_mode = #tpu.pipeline_mode<synchronous>, transform_indices = @transform_10, window_bounds = array<i64: 1, 1>}, {transform_indices = @transform_11, window_bounds = array<i64: 1, 256>}]} {
    %c0 = arith.constant 0 : index
    %c0_0 = arith.constant 0 : index
    %0 = vector.load %arg1[%c0, %c0_0] : memref<256x256xbf16, #tpu.memory_space<vmem>>, vector<64x256xbf16>
    %1 = arith.extf %0 : vector<64x256xbf16> to vector<64x256xf32>
    %c64 = arith.constant 64 : index
    %c0_1 = arith.constant 0 : index
    %2 = vector.load %arg1[%c64, %c0_1] : memref<256x256xbf16, #tpu.memory_space<vmem>>, vector<64x256xbf16>
    %3 = arith.extf %2 : vector<64x256xbf16> to vector<64x256xf32>
    %c128 = arith.constant 128 : index
    %c0_2 = arith.constant 0 : index
    %4 = vector.load %arg1[%c128, %c0_2] : memref<256x256xbf16, #tpu.memory_space<vmem>>, vector<64x256xbf16>
    %5 = arith.extf %4 : vector<64x256xbf16> to vector<64x256xf32>
    %c192 = arith.constant 192 : index
    %c0_3 = arith.constant 0 : index
    %6 = vector.load %arg1[%c192, %c0_3] : memref<256x256xbf16, #tpu.memory_space<vmem>>, vector<64x256xbf16>
    %7 = arith.extf %6 : vector<64x256xbf16> to vector<64x256xf32>
    %c0_4 = arith.constant 0 : index
    %8 = memref.load %arg2[%c0_4] : memref<9xf32, #tpu.memory_space<smem>>
    %c1 = arith.constant 1 : index
    %9 = memref.load %arg2[%c1] : memref<9xf32, #tpu.memory_space<smem>>
    %c2 = arith.constant 2 : index
    %10 = memref.load %arg2[%c2] : memref<9xf32, #tpu.memory_space<smem>>
    %c0_5 = arith.constant 0 : index
    %11 = memref.load %arg3[%c0_5] : memref<3xf32, #tpu.memory_space<smem>>
    %12 = vector.broadcast %8 : f32 to vector<64x256xf32>
    %13 = arith.mulf %12, %1 : vector<64x256xf32>
    %14 = vector.broadcast %9 : f32 to vector<64x256xf32>
    %15 = arith.mulf %14, %3 : vector<64x256xf32>
    %16 = arith.addf %13, %15 : vector<64x256xf32>
    %17 = vector.broadcast %10 : f32 to vector<64x256xf32>
    %18 = arith.mulf %17, %5 : vector<64x256xf32>
    %19 = arith.addf %16, %18 : vector<64x256xf32>
    %20 = vector.broadcast %11 : f32 to vector<64x256xf32>
    %21 = arith.addf %19, %20 : vector<64x256xf32>
    %cst = arith.constant 0.000000e+00 : f32
    %22 = vector.broadcast %cst : f32 to vector<64x256xf32>
    %23 = arith.maximumf %21, %22 : vector<64x256xf32>
    %24 = vector.broadcast %8 : f32 to vector<64x256xf32>
    %25 = arith.mulf %24, %3 : vector<64x256xf32>
    %26 = vector.broadcast %9 : f32 to vector<64x256xf32>
    %27 = arith.mulf %26, %5 : vector<64x256xf32>
    %28 = arith.addf %25, %27 : vector<64x256xf32>
    %29 = vector.broadcast %10 : f32 to vector<64x256xf32>
    %30 = arith.mulf %29, %7 : vector<64x256xf32>
    %31 = arith.addf %28, %30 : vector<64x256xf32>
    %32 = vector.broadcast %11 : f32 to vector<64x256xf32>
    %33 = arith.addf %31, %32 : vector<64x256xf32>
    %cst_6 = arith.constant 0.000000e+00 : f32
    %34 = vector.broadcast %cst_6 : f32 to vector<64x256xf32>
    %35 = arith.maximumf %33, %34 : vector<64x256xf32>
    %c3 = arith.constant 3 : index
    %36 = memref.load %arg2[%c3] : memref<9xf32, #tpu.memory_space<smem>>
    %c4 = arith.constant 4 : index
    %37 = memref.load %arg2[%c4] : memref<9xf32, #tpu.memory_space<smem>>
    %c5 = arith.constant 5 : index
    %38 = memref.load %arg2[%c5] : memref<9xf32, #tpu.memory_space<smem>>
    %c1_7 = arith.constant 1 : index
    %39 = memref.load %arg3[%c1_7] : memref<3xf32, #tpu.memory_space<smem>>
    %40 = vector.broadcast %36 : f32 to vector<64x256xf32>
    %41 = arith.mulf %40, %1 : vector<64x256xf32>
    %42 = vector.broadcast %37 : f32 to vector<64x256xf32>
    %43 = arith.mulf %42, %3 : vector<64x256xf32>
    %44 = arith.addf %41, %43 : vector<64x256xf32>
    %45 = vector.broadcast %38 : f32 to vector<64x256xf32>
    %46 = arith.mulf %45, %5 : vector<64x256xf32>
    %47 = arith.addf %44, %46 : vector<64x256xf32>
    %48 = vector.broadcast %39 : f32 to vector<64x256xf32>
    %49 = arith.addf %47, %48 : vector<64x256xf32>
    %cst_8 = arith.constant 0.000000e+00 : f32
    %50 = vector.broadcast %cst_8 : f32 to vector<64x256xf32>
    %51 = arith.maximumf %49, %50 : vector<64x256xf32>
    %52 = vector.broadcast %36 : f32 to vector<64x256xf32>
    %53 = arith.mulf %52, %3 : vector<64x256xf32>
    %54 = vector.broadcast %37 : f32 to vector<64x256xf32>
    %55 = arith.mulf %54, %5 : vector<64x256xf32>
    %56 = arith.addf %53, %55 : vector<64x256xf32>
    %57 = vector.broadcast %38 : f32 to vector<64x256xf32>
    %58 = arith.mulf %57, %7 : vector<64x256xf32>
    %59 = arith.addf %56, %58 : vector<64x256xf32>
    %60 = vector.broadcast %39 : f32 to vector<64x256xf32>
    %61 = arith.addf %59, %60 : vector<64x256xf32>
    %cst_9 = arith.constant 0.000000e+00 : f32
    %62 = vector.broadcast %cst_9 : f32 to vector<64x256xf32>
    %63 = arith.maximumf %61, %62 : vector<64x256xf32>
    %c6 = arith.constant 6 : index
    %64 = memref.load %arg2[%c6] : memref<9xf32, #tpu.memory_space<smem>>
    %c7 = arith.constant 7 : index
    %65 = memref.load %arg2[%c7] : memref<9xf32, #tpu.memory_space<smem>>
    %c8 = arith.constant 8 : index
    %66 = memref.load %arg2[%c8] : memref<9xf32, #tpu.memory_space<smem>>
    %c2_10 = arith.constant 2 : index
    %67 = memref.load %arg3[%c2_10] : memref<3xf32, #tpu.memory_space<smem>>
    %68 = vector.broadcast %64 : f32 to vector<64x256xf32>
    %69 = arith.mulf %68, %1 : vector<64x256xf32>
    %70 = vector.broadcast %65 : f32 to vector<64x256xf32>
    %71 = arith.mulf %70, %3 : vector<64x256xf32>
    %72 = arith.addf %69, %71 : vector<64x256xf32>
    %73 = vector.broadcast %66 : f32 to vector<64x256xf32>
    %74 = arith.mulf %73, %5 : vector<64x256xf32>
    %75 = arith.addf %72, %74 : vector<64x256xf32>
    %76 = vector.broadcast %67 : f32 to vector<64x256xf32>
    %77 = arith.addf %75, %76 : vector<64x256xf32>
    %cst_11 = arith.constant 0.000000e+00 : f32
    %78 = vector.broadcast %cst_11 : f32 to vector<64x256xf32>
    %79 = arith.maximumf %77, %78 : vector<64x256xf32>
    %80 = vector.broadcast %64 : f32 to vector<64x256xf32>
    %81 = arith.mulf %80, %3 : vector<64x256xf32>
    %82 = vector.broadcast %65 : f32 to vector<64x256xf32>
    %83 = arith.mulf %82, %5 : vector<64x256xf32>
    %84 = arith.addf %81, %83 : vector<64x256xf32>
    %85 = vector.broadcast %66 : f32 to vector<64x256xf32>
    %86 = arith.mulf %85, %7 : vector<64x256xf32>
    %87 = arith.addf %84, %86 : vector<64x256xf32>
    %88 = vector.broadcast %67 : f32 to vector<64x256xf32>
    %89 = arith.addf %87, %88 : vector<64x256xf32>
    %cst_12 = arith.constant 0.000000e+00 : f32
    %90 = vector.broadcast %cst_12 : f32 to vector<64x256xf32>
    %91 = arith.maximumf %89, %90 : vector<64x256xf32>
    %92 = tpu.concatenate %23, %35, %51, %63, %79, %91 in 0 : vector<64x256xf32>, vector<64x256xf32>, vector<64x256xf32>, vector<64x256xf32>, vector<64x256xf32>, vector<64x256xf32> -> vector<384x256xf32>
    %c0_13 = arith.constant 0 : index
    %c0_14 = arith.constant 0 : index
    %93 = vector.load %arg4[%c0_13, %c0_14] : memref<250x384xbf16, #tpu.memory_space<vmem>>, vector<250x384xbf16>
    %94 = arith.truncf %92 : vector<384x256xf32> to vector<384x256xbf16>
    %cst_15 = arith.constant dense<0.000000e+00> : vector<250x256xf32>
    %95 = tpu.matmul %93, %94, %cst_15 {dimension_numbers = #tpu.dot_dimension_numbers<[1], [0], [0], [1], [0, 0, 1, 1], [], []>} : vector<250x384xbf16>, vector<384x256xbf16>, vector<250x256xf32> -> vector<250x256xf32>
    %c0_16 = arith.constant 0 : index
    %c0_17 = arith.constant 0 : index
    %96 = vector.load %arg5[%c0_16, %c0_17] : memref<250x1xf32, #tpu.memory_space<vmem>>, vector<250x1xf32>
    %97 = vector.broadcast %96 : vector<250x1xf32> to vector<250x256xf32>
    %98 = arith.addf %95, %97 : vector<250x256xf32>
    %cst_18 = arith.constant 0.000000e+00 : f32
    %99 = vector.broadcast %cst_18 : f32 to vector<250x256xf32>
    %100 = arith.maximumf %98, %99 : vector<250x256xf32>
    %c0_19 = arith.constant 0 : index
    %c0_20 = arith.constant 0 : index
    %101 = vector.load %arg6[%c0_19, %c0_20] : memref<45x250xbf16, #tpu.memory_space<vmem>>, vector<45x250xbf16>
    %102 = arith.truncf %100 : vector<250x256xf32> to vector<250x256xbf16>
    %cst_21 = arith.constant dense<0.000000e+00> : vector<45x256xf32>
    %103 = tpu.matmul %101, %102, %cst_21 {dimension_numbers = #tpu.dot_dimension_numbers<[1], [0], [0], [1], [0, 0, 1, 1], [], []>} : vector<45x250xbf16>, vector<250x256xbf16>, vector<45x256xf32> -> vector<45x256xf32>
    %c0_22 = arith.constant 0 : index
    %c0_23 = arith.constant 0 : index
    %104 = vector.load %arg7[%c0_22, %c0_23] : memref<45x1xf32, #tpu.memory_space<vmem>>, vector<45x1xf32>
    %105 = vector.broadcast %104 : vector<45x1xf32> to vector<45x256xf32>
    %106 = arith.addf %103, %105 : vector<45x256xf32>
    %cst_24 = arith.constant 0.000000e+00 : f32
    %107 = vector.broadcast %cst_24 : f32 to vector<45x256xf32>
    %108 = arith.maximumf %106, %107 : vector<45x256xf32>
    %c0_25 = arith.constant 0 : index
    %c0_26 = arith.constant 0 : index
    %109 = vector.load %arg8[%c0_25, %c0_26] : memref<9x45xbf16, #tpu.memory_space<vmem>>, vector<9x45xbf16>
    %110 = arith.truncf %108 : vector<45x256xf32> to vector<45x256xbf16>
    %cst_27 = arith.constant dense<0.000000e+00> : vector<9x256xf32>
    %111 = tpu.matmul %109, %110, %cst_27 {dimension_numbers = #tpu.dot_dimension_numbers<[1], [0], [0], [1], [0, 0, 1, 1], [], []>} : vector<9x45xbf16>, vector<45x256xbf16>, vector<9x256xf32> -> vector<9x256xf32>
    %c0_28 = arith.constant 0 : index
    %c0_29 = arith.constant 0 : index
    %112 = vector.load %arg9[%c0_28, %c0_29] : memref<9x1xf32, #tpu.memory_space<vmem>>, vector<9x1xf32>
    %113 = vector.broadcast %112 : vector<9x1xf32> to vector<9x256xf32>
    %114 = arith.addf %111, %113 : vector<9x256xf32>
    %cst_30 = arith.constant 0.000000e+00 : f32
    %115 = vector.broadcast %cst_30 : f32 to vector<9x256xf32>
    %116 = arith.subf %115, %114 : vector<9x256xf32>
    %117 = math.exp %116 : vector<9x256xf32>
    %cst_31 = arith.constant 1.000000e+00 : f32
    %118 = vector.broadcast %cst_31 : f32 to vector<9x256xf32>
    %119 = arith.addf %118, %117 : vector<9x256xf32>
    %120 = tpu.reciprocal %119 {approx = true} : vector<9x256xf32> -> vector<9x256xf32>
    %c0_32 = arith.constant 0 : index
    %c0_33 = arith.constant 0 : index
    %121 = vector.load %arg10[%c0_32, %c0_33] : memref<9x1xf32, #tpu.memory_space<vmem>>, vector<9x1xf32>
    %122 = vector.broadcast %121 : vector<9x1xf32> to vector<9x256xf32>
    %123 = arith.mulf %120, %122 : vector<9x256xf32>
    %cst_34 = arith.constant dense<0.000000e+00> : vector<256xf32>
    %124 = vector.multi_reduction <add>, %123, %cst_34 [0] : vector<9x256xf32> to vector<256xf32>
    %125 = vector.shape_cast %124 : vector<256xf32> to vector<1x256xf32>
    %c0_35 = arith.constant 0 : index
    %c0_36 = arith.constant 0 : index
    %126 = vector.load %arg11[%c0_35, %c0_36] : memref<1x1xf32, #tpu.memory_space<vmem>>, vector<1x1xf32>
    %127 = vector.broadcast %126 : vector<1x1xf32> to vector<1x256xf32>
    %128 = arith.addf %125, %127 : vector<1x256xf32>
    %c0_37 = arith.constant 0 : index
    %c0_38 = arith.constant 0 : index
    %129 = vector.load %arg12[%c0_37, %c0_38] : memref<1x256xf32, #tpu.memory_space<vmem>>, vector<1x256xf32>
    tpu.vector_store %arg12[%c0_37, %c0_38], %128 {strides = array<i32>} : memref<1x256xf32, #tpu.memory_space<vmem>>, vector<1x256xf32>,
    return
  }
  func.func @transform_0(%arg0: i32) -> (i32, i32) {
    %c0_i32 = arith.constant 0 : i32
    %c0_i32_0 = arith.constant 0 : i32
    return %c0_i32, %arg0 : i32, i32
  }
  func.func @transform_1(%arg0: i32) -> i32 {
    %c0_i32 = arith.constant 0 : i32
    %c0_i32_0 = arith.constant 0 : i32
    return %c0_i32 : i32
  }
  func.func @transform_2(%arg0: i32) -> i32 {
    %c0_i32 = arith.constant 0 : i32
    %c0_i32_0 = arith.constant 0 : i32
    return %c0_i32 : i32
  }
  func.func @transform_3(%arg0: i32) -> (i32, i32) {
    %c0_i32 = arith.constant 0 : i32
    %c0_i32_0 = arith.constant 0 : i32
    %c0_i32_1 = arith.constant 0 : i32
    return %c0_i32, %c0_i32_0 : i32, i32
  }
  func.func @transform_4(%arg0: i32) -> (i32, i32) {
    %c0_i32 = arith.constant 0 : i32
    %c0_i32_0 = arith.constant 0 : i32
    %c0_i32_1 = arith.constant 0 : i32
    return %c0_i32, %c0_i32_0 : i32, i32
  }
  func.func @transform_5(%arg0: i32) -> (i32, i32) {
    %c0_i32 = arith.constant 0 : i32
    %c0_i32_0 = arith.constant 0 : i32
    %c0_i32_1 = arith.constant 0 : i32
    return %c0_i32, %c0_i32_0 : i32, i32
  }
  func.func @transform_6(%arg0: i32) -> (i32, i32) {
    %c0_i32 = arith.constant 0 : i32
    %c0_i32_0 = arith.constant 0 : i32
    %c0_i32_1 = arith.constant 0 : i32
    return %c0_i32, %c0_i32_0 : i32, i32
  }
  func.func @transform_7(%arg0: i32) -> (i32, i32) {
    %c0_i32 = arith.constant 0 : i32
    %c0_i32_0 = arith.constant 0 : i32
    %c0_i32_1 = arith.constant 0 : i32
    return %c0_i32, %c0_i32_0 : i32, i32
  }
  func.func @transform_8(%arg0: i32) -> (i32, i32) {
    %c0_i32 = arith.constant 0 : i32
    %c0_i32_0 = arith.constant 0 : i32
    %c0_i32_1 = arith.constant 0 : i32
    return %c0_i32, %c0_i32_0 : i32, i32
  }
  func.func @transform_9(%arg0: i32) -> (i32, i32) {
    %c0_i32 = arith.constant 0 : i32
    %c0_i32_0 = arith.constant 0 : i32
    %c0_i32_1 = arith.constant 0 : i32
    return %c0_i32, %c0_i32_0 : i32, i32
  }
  func.func @transform_10(%arg0: i32) -> (i32, i32) {
    %c0_i32 = arith.constant 0 : i32
    %c0_i32_0 = arith.constant 0 : i32
    %c0_i32_1 = arith.constant 0 : i32
    return %c0_i32, %c0_i32_0 : i32, i32
  }
  func.func @transform_11(%arg0: i32) -> (i32, i32) {
    %c0_i32 = arith.constant 0 : i32
    %c0_i32_0 = arith.constant 0 : i32
    return %c0_i32, %arg0 : i32, i32
  }
}

</mosaic_0001>

<llo_original>
// kernel: squeeze.4
$region0: #{squeeze.4}
  %s0 = inlined_call_operand.vmem [shape: f32[3,3], index: 0, kind: input, shape index: {}]
  %s1 = inlined_call_operand.vmem [shape: f32[9], index: 1, kind: output, shape index: {}]
  $region1: #{squeeze.4} parent=0
    #allocation0 [shape = 'u8[4096]{0}', space=vmem, size = 0x1000, scoped, tag = 'scoped mem for output reshape']
    #allocation1 [shape = 'u8[4096]{0}', space=vmem, size = 0x1000, scoped, tag = 'scoped mem for input reshape']
    %s3 = sshllo.u32 0, 4
    %v4 = vld [vmem:[%s0] sm:%s3]
    %5 = vst [vmem:[#allocation1] sm:%s3] %v4
    %v6 = vld [vmem:[#allocation1] sm:$0x1]
    %vm7 = vcmask 23552
    %8 = vst.msk [vmem:[#allocation0] sm:$0x1] %vm7, %v6
    %s9 = scalar_lea.vmem [#allocation1], 2
    %v10 = vld [vmem:[%s9] sm:$0x1]
    %11 = vrot.lane.b32.xlu0 %v10, 6
    %v12 = vpop.permute.xlu0 %11
    %vm13 = vcmask 72752
    %14 = vst.msk [vmem:[#allocation0] sm:$0x1] %vm13, %v12
    %s15 = scalar_lea.vmem [#allocation1], 1
    %v16 = vld [vmem:[%s15] sm:$0x1]
    %17 = vrot.lane.b32.xlu0 %v16, 3
    %v18 = vpop.permute.xlu0 %17
    %vm19 = vcmask 48152
    %20 = vst.msk [vmem:[#allocation0] sm:$0x1] %vm19, %v18
    %s22 = sshllo.u32 0, 1
    %v24 = vld [vmem:[#allocation0] sm:%s22]
    %s25 = sshllo.u32 0, 1
    %26 = vst [vmem:[%s1] sm:%s25] %v24

// kernel: waternet_forward.1
$region0: #{waternet_forward.1}
  #allocation0 [shape = 'u32[]', space=smem, size = 0x4, offset = 0x4, fixed_abs, tag = 'smem constant byte address 0x4 - core index']
  #allocation1 [shape = 'u32[144,128]{1,0:T(1,128)}', space=vmem, size = 0x12000, scoped, tag = 'internal scratch']
  #allocation2 [shape = 'f32[1,1]{1,0:T(1,128)S(1)}', space=vmem, size = 0x200, scoped, tag = 'scoped memory for waternet_forward.1']
  %s0 = inlined_call_operand.vmem [shape: bf16[256,256], index: 0, kind: input, shape index: {}]
  %s1 = inlined_call_operand.vmem [shape: f32[9], index: 1, kind: input, shape index: {}]
  %s2 = inlined_call_operand.vmem [shape: f32[3], index: 2, kind: input, shape index: {}]
  %s3 = inlined_call_operand.vmem [shape: bf16[250,384], index: 3, kind: input, shape index: {}]
  %s4 = inlined_call_operand.vmem [shape: f32[250,1], index: 4, kind: input, shape index: {}]
  %s5 = inlined_call_operand.vmem [shape: bf16[45,250], index: 5, kind: input, shape index: {}]
  %s6 = inlined_call_operand.vmem [shape: f32[45,1], index: 6, kind: input, shape index: {}]
  %s7 = inlined_call_operand.vmem [shape: bf16[9,45], index: 7, kind: input, shape index: {}]
  %s8 = inlined_call_operand.vmem [shape: f32[9,1], index: 8, kind: input, shape index: {}]
  %s9 = inlined_call_operand.vmem [shape: f32[9,1], index: 9, kind: input, shape index: {}]
  %s10 = inlined_call_operand.<no memory space> [shape: f32[1,1], index: 10, kind: input, shape index: {}]
  %s11 = inlined_call_operand.vmem [shape: f32[1,256], index: 11, kind: output, shape index: {}]
  %s12 = sld [smem:[#allocation0]]
  $region62: #{waternet_forward.1} parent=0
    _
  %s14 = ssub.s32 1, %s12
  %s15 = scalar_select 0, %s14, %s12
  %v16 = vstv %s10
  %17 = vst [vmem:[#allocation2] sm:$0x1] %v16
  $region1: #{waternet_forward.1} parent=0
    #allocation3 [shape = 'u8[512]{0}', space=smem, size = 0x200, scoped, tag = 'input window, operand 1, single buffered']
    #allocation4 [shape = 's32[1]{0}', space=sflag, size = 0x4, scoped, tag = 'scoped memory for waternet_forward.1']
    #allocation5 [shape = 'u8[512]{0}', space=smem, size = 0x200, scoped, tag = 'input window, operand 2, single buffered']
    #allocation6 [shape = 's32[1]{0}', space=sflag, size = 0x4, scoped, tag = 'scoped memory for waternet_forward.1']
    %18 = vsyncpa [#allocation4], 0
    %19 = vsyncpa [#allocation6], 0
    // Predicated region
    $region2: #{waternet_forward.1} parent=1 // pred_check
      _
    $region3: #{waternet_forward.1} parent=1 // pred_check_branch
      %21 = sbr.rel (0) target = $region5
    $region4: #{waternet_forward.1} parent=1 // pred_region
      _
    $region5: #{waternet_forward.1} parent=1 // pred_fallthru
      _
    // Predicated region
    $region6: #{waternet_forward.1} parent=1 // pred_check
      _
    $region7: #{waternet_forward.1} parent=1 // pred_check_branch
      %23 = sbr.rel (0) target = $region9
    $region8: #{waternet_forward.1} parent=1 // pred_region
      %s25 = ssub.s32 16, 16
      %26 = vsyncadd [#allocation4], %s25
      %s28 = sshll.u32 %s1, 4
      %s29 = int_to_ptr.vmem [resolvable:$true] %s28
      %31 = dma.vmem_to_smem %s29, 16, [#allocation3], [#allocation4]
    $region9: #{waternet_forward.1} parent=1 // pred_fallthru
      _
    // Predicated region
    $region10: #{waternet_forward.1} parent=1 // pred_check
      _
    $region11: #{waternet_forward.1} parent=1 // pred_check_branch
      %33 = sbr.rel (0) target = $region13
    $region12: #{waternet_forward.1} parent=1 // pred_region
      %s35 = ssub.s32 16, 16
      %36 = vsyncadd [#allocation6], %s35
      %s38 = sshll.u32 %s2, 4
      %s39 = int_to_ptr.vmem [resolvable:$true] %s38
      %41 = dma.vmem_to_smem %s39, 16, [#allocation5], [#allocation6]
    $region13: #{waternet_forward.1} parent=1 // pred_fallthru
      _
    // Predicated region
    $region14: #{waternet_forward.1} parent=1 // pred_check
      _
    $region15: #{waternet_forward.1} parent=1 // pred_check_branch
      %43 = sbr.rel (0) target = $region17
    $region16: #{waternet_forward.1} parent=1 // pred_region
      _
    $region17: #{waternet_forward.1} parent=1 // pred_fallthru
      _
    // Predicated region
    $region18: #{waternet_forward.1} parent=1 // pred_check
      _
    $region19: #{waternet_forward.1} parent=1 // pred_check_branch
      %45 = sbr.rel (0) target = $region21
    $region20: #{waternet_forward.1} parent=1 // pred_region
      _
    $region21: #{waternet_forward.1} parent=1 // pred_fallthru
      _
    // Predicated region
    $region22: #{waternet_forward.1} parent=1 // pred_check
      _
    $region23: #{waternet_forward.1} parent=1 // pred_check_branch
      %47 = sbr.rel (0) target = $region25
    $region24: #{waternet_forward.1} parent=1 // pred_region
      _
    $region25: #{waternet_forward.1} parent=1 // pred_fallthru
      _
    // Predicated region
    $region26: #{waternet_forward.1} parent=1 // pred_check
      _
    $region27: #{waternet_forward.1} parent=1 // pred_check_branch
      %49 = sbr.rel (0) target = $region29
    $region28: #{waternet_forward.1} parent=1 // pred_region
      _
    $region29: #{waternet_forward.1} parent=1 // pred_fallthru
      _
    // Predicated region
    $region30: #{waternet_forward.1} parent=1 // pred_check
      _
    $region31: #{waternet_forward.1} parent=1 // pred_check_branch
      %51 = sbr.rel (0) target = $region33
    $region32: #{waternet_forward.1} parent=1 // pred_region
      _
    $region33: #{waternet_forward.1} parent=1 // pred_fallthru
      _
    // Predicated region
    $region34: #{waternet_forward.1} parent=1 // pred_check
      _
    $region35: #{waternet_forward.1} parent=1 // pred_check_branch
      %53 = sbr.rel (0) target = $region37
    $region36: #{waternet_forward.1} parent=1 // pred_region
      _
    $region37: #{waternet_forward.1} parent=1 // pred_fallthru
      _
    // Predicated region
    $region38: #{waternet_forward.1} parent=1 // pred_check
      _
    $region39: #{waternet_forward.1} parent=1 // pred_check_branch
      %55 = sbr.rel (0) target = $region41
    $region40: #{waternet_forward.1} parent=1 // pred_region
      _
    $region41: #{waternet_forward.1} parent=1 // pred_fallthru
      _
    // Predicated region
    $region42: #{waternet_forward.1} parent=1 // pred_check
      _
    $region43: #{waternet_forward.1} parent=1 // pred_check_branch
      %57 = sbr.rel (0) target = $region45
    $region44: #{waternet_forward.1} parent=1 // pred_region
      _
    $region45: #{waternet_forward.1} parent=1 // pred_fallthru
      _
    // Predicated region
    $region46: #{waternet_forward.1} parent=1 // pred_check
      _
    $region47: #{waternet_forward.1} parent=1 // pred_check_branch
      %59 = sbr.rel (0) target = $region49
    $region48: #{waternet_forward.1} parent=1 // pred_region
      %60 = dma.done [#allocation4], 16
    $region49: #{waternet_forward.1} parent=1 // pred_fallthru
      _
    // Predicated region
    $region50: #{waternet_forward.1} parent=1 // pred_check
      _
    $region51: #{waternet_forward.1} parent=1 // pred_check_branch
      %62 = sbr.rel (0) target = $region53
    $region52: #{waternet_forward.1} parent=1 // pred_region
      %63 = dma.done [#allocation6], 16
    $region53: #{waternet_forward.1} parent=1 // pred_fallthru
      _
    %64 = sfence
    %v66 = vld [vmem:[%s0] sm:$0xff]
    %v67 = vld [vmem:[%s0 + $0x8] sm:$0xff]
    %v68 = vld [vmem:[%s0 + $0x10] sm:$0xff]
    %v69 = vld [vmem:[%s0 + $0x18] sm:$0xff]
    %v70 = vld [vmem:[%s0 + $0x20] sm:$0xff]
    %v71 = vld [vmem:[%s0 + $0x28] sm:$0xff]
    %v72 = vld [vmem:[%s0 + $0x30] sm:$0xff]
    %v73 = vld [vmem:[%s0 + $0x38] sm:$0xff]
    %v74 = vunpack.c.l.bf16 %v66
    %v75 = vunpack.c.h.bf16 %v66
    %v76 = vunpack.c.l.bf16 %v67
    %v77 = vunpack.c.h.bf16 %v67
    %v78 = vunpack.c.l.bf16 %v68
    %v79 = vunpack.c.h.bf16 %v68
    %v80 = vunpack.c.l.bf16 %v69
    %v81 = vunpack.c.h.bf16 %v69
    %v82 = vunpack.c.l.bf16 %v70
    %v83 = vunpack.c.h.bf16 %v70
    %v84 = vunpack.c.l.bf16 %v71
    %v85 = vunpack.c.h.bf16 %v71
    %v86 = vunpack.c.l.bf16 %v72
    %v87 = vunpack.c.h.bf16 %v72
    %v88 = vunpack.c.l.bf16 %v73
    %v89 = vunpack.c.h.bf16 %v73
    %v90 = vld [vmem:[%s0 + $0x40] sm:$0xff]
    %v91 = vld [vmem:[%s0 + $0x48] sm:$0xff]
    %v92 = vld [vmem:[%s0 + $0x50] sm:$0xff]
    %v93 = vld [vmem:[%s0 + $0x58] sm:$0xff]
    %v94 = vld [vmem:[%s0 + $0x60] sm:$0xff]
    %v95 = vld [vmem:[%s0 + $0x68] sm:$0xff]
    %v96 = vld [vmem:[%s0 + $0x70] sm:$0xff]
    %v97 = vld [vmem:[%s0 + $0x78] sm:$0xff]
    %v98 = vunpack.c.l.bf16 %v90
    %v99 = vunpack.c.h.bf16 %v90
    %v100 = vunpack.c.l.bf16 %v91
    %v101 = vunpack.c.h.bf16 %v91
    %v102 = vunpack.c.l.bf16 %v92
    %v103 = vunpack.c.h.bf16 %v92
    %v104 = vunpack.c.l.bf16 %v93
    %v105 = vunpack.c.h.bf16 %v93
    %v106 = vunpack.c.l.bf16 %v94
    %v107 = vunpack.c.h.bf16 %v94
    %v108 = vunpack.c.l.bf16 %v95
    %v109 = vunpack.c.h.bf16 %v95
    %v110 = vunpack.c.l.bf16 %v96
    %v111 = vunpack.c.h.bf16 %v96
    %v112 = vunpack.c.l.bf16 %v97
    %v113 = vunpack.c.h.bf16 %v97
    %v114 = vld [vmem:[%s0 + $0x80] sm:$0xff]
    %v115 = vld [vmem:[%s0 + $0x88] sm:$0xff]
    %v116 = vld [vmem:[%s0 + $0x90] sm:$0xff]
    %v117 = vld [vmem:[%s0 + $0x98] sm:$0xff]
    %v118 = vld [vmem:[%s0 + $0xa0] sm:$0xff]
    %v119 = vld [vmem:[%s0 + $0xa8] sm:$0xff]
    %v120 = vld [vmem:[%s0 + $0xb0] sm:$0xff]
    %v121 = vld [vmem:[%s0 + $0xb8] sm:$0xff]
    %v122 = vunpack.c.l.bf16 %v114
    %v123 = vunpack.c.h.bf16 %v114
    %v124 = vunpack.c.l.bf16 %v115
    %v125 = vunpack.c.h.bf16 %v115
    %v126 = vunpack.c.l.bf16 %v116
    %v127 = vunpack.c.h.bf16 %v116
    %v128 = vunpack.c.l.bf16 %v117
    %v129 = vunpack.c.h.bf16 %v117
    %v130 = vunpack.c.l.bf16 %v118
    %v131 = vunpack.c.h.bf16 %v118
    %v132 = vunpack.c.l.bf16 %v119
    %v133 = vunpack.c.h.bf16 %v119
    %v134 = vunpack.c.l.bf16 %v120
    %v135 = vunpack.c.h.bf16 %v120
    %v136 = vunpack.c.l.bf16 %v121
    %v137 = vunpack.c.h.bf16 %v121
    %v138 = vld [vmem:[%s0 + $0xc0] sm:$0xff]
    %v139 = vld [vmem:[%s0 + $0xc8] sm:$0xff]
    %v140 = vld [vmem:[%s0 + $0xd0] sm:$0xff]
    %v141 = vld [vmem:[%s0 + $0xd8] sm:$0xff]
    %v142 = vld [vmem:[%s0 + $0xe0] sm:$0xff]
    %v143 = vld [vmem:[%s0 + $0xe8] sm:$0xff]
    %v144 = vld [vmem:[%s0 + $0xf0] sm:$0xff]
    %v145 = vld [vmem:[%s0 + $0xf8] sm:$0xff]
    %v146 = vunpack.c.l.bf16 %v138
    %v147 = vunpack.c.h.bf16 %v138
    %v148 = vunpack.c.l.bf16 %v139
    %v149 = vunpack.c.h.bf16 %v139
    %v150 = vunpack.c.l.bf16 %v140
    %v151 = vunpack.c.h.bf16 %v140
    %v152 = vunpack.c.l.bf16 %v141
    %v153 = vunpack.c.h.bf16 %v141
    %v154 = vunpack.c.l.bf16 %v142
    %v155 = vunpack.c.h.bf16 %v142
    %v156 = vunpack.c.l.bf16 %v143
    %v157 = vunpack.c.h.bf16 %v143
    %v158 = vunpack.c.l.bf16 %v144
    %v159 = vunpack.c.h.bf16 %v144
    %v160 = vunpack.c.l.bf16 %v145
    %v161 = vunpack.c.h.bf16 %v145
    %s162 = sld [smem:[#allocation3]]
    %s163 = sld [smem:[#allocation3 + $0x1]]
    %s164 = sld [smem:[#allocation3 + $0x2]]
    %s165 = sld [smem:[#allocation5]]
    %v166 = vstv %s162
    %v167 = vmul.f32 %v166, %v74
    %v168 = vmul.f32 %v166, %v75
    %v169 = vmul.f32 %v166, %v76
    %v170 = vmul.f32 %v166, %v77
    %v171 = vmul.f32 %v166, %v78
    %v172 = vmul.f32 %v166, %v79
    %v173 = vmul.f32 %v166, %v80
    %v174 = vmul.f32 %v166, %v81
    %v175 = vmul.f32 %v166, %v82
    %v176 = vmul.f32 %v166, %v83
    %v177 = vmul.f32 %v166, %v84
    %v178 = vmul.f32 %v166, %v85
    %v179 = vmul.f32 %v166, %v86
    %v180 = vmul.f32 %v166, %v87
    %v181 = vmul.f32 %v166, %v88
    %v182 = vmul.f32 %v166, %v89
    %v183 = vstv %s163
    %v184 = vmul.f32 %v183, %v98
    %v185 = vmul.f32 %v183, %v99
    %v186 = vmul.f32 %v183, %v100
    %v187 = vmul.f32 %v183, %v101
    %v188 = vmul.f32 %v183, %v102
    %v189 = vmul.f32 %v183, %v103
    %v190 = vmul.f32 %v183, %v104
    %v191 = vmul.f32 %v183, %v105
    %v192 = vmul.f32 %v183, %v106
    %v193 = vmul.f32 %v183, %v107
    %v194 = vmul.f32 %v183, %v108
    %v195 = vmul.f32 %v183, %v109
    %v196 = vmul.f32 %v183, %v110
    %v197 = vmul.f32 %v183, %v111
    %v198 = vmul.f32 %v183, %v112
    %v199 = vmul.f32 %v183, %v113
    %v200 = vadd.f32 %v167, %v184
    %v201 = vadd.f32 %v168, %v185
    %v202 = vadd.f32 %v169, %v186
    %v203 = vadd.f32 %v170, %v187
    %v204 = vadd.f32 %v171, %v188
    %v205 = vadd.f32 %v172, %v189
    %v206 = vadd.f32 %v173, %v190
    %v207 = vadd.f32 %v174, %v191
    %v208 = vadd.f32 %v175, %v192
    %v209 = vadd.f32 %v176, %v193
    %v210 = vadd.f32 %v177, %v194
    %v211 = vadd.f32 %v178, %v195
    %v212 = vadd.f32 %v179, %v196
    %v213 = vadd.f32 %v180, %v197
    %v214 = vadd.f32 %v181, %v198
    %v215 = vadd.f32 %v182, %v199
    %v216 = vstv %s164
    %v217 = vmul.f32 %v216, %v122
    %v218 = vmul.f32 %v216, %v123
    %v219 = vmul.f32 %v216, %v124
    %v220 = vmul.f32 %v216, %v125
    %v221 = vmul.f32 %v216, %v126
    %v222 = vmul.f32 %v216, %v127
    %v223 = vmul.f32 %v216, %v128
    %v224 = vmul.f32 %v216, %v129
    %v225 = vmul.f32 %v216, %v130
    %v226 = vmul.f32 %v216, %v131
    %v227 = vmul.f32 %v216, %v132
    %v228 = vmul.f32 %v216, %v133
    %v229 = vmul.f32 %v216, %v134
    %v230 = vmul.f32 %v216, %v135
    %v231 = vmul.f32 %v216, %v136
    %v232 = vmul.f32 %v216, %v137
    %v233 = vadd.f32 %v200, %v217
    %v234 = vadd.f32 %v201, %v218
    %v235 = vadd.f32 %v202, %v219
    %v236 = vadd.f32 %v203, %v220
    %v237 = vadd.f32 %v204, %v221
    %v238 = vadd.f32 %v205, %v222
    %v239 = vadd.f32 %v206, %v223
    %v240 = vadd.f32 %v207, %v224
    %v241 = vadd.f32 %v208, %v225
    %v242 = vadd.f32 %v209, %v226
    %v243 = vadd.f32 %v210, %v227
    %v244 = vadd.f32 %v211, %v228
    %v245 = vadd.f32 %v212, %v229
    %v246 = vadd.f32 %v213, %v230
    %v247 = vadd.f32 %v214, %v231
    %v248 = vadd.f32 %v215, %v232
    %v249 = vstv %s165
    %v250 = vadd.f32 %v233, %v249
    %v251 = vadd.f32 %v234, %v249
    %v252 = vadd.f32 %v235, %v249
    %v253 = vadd.f32 %v236, %v249
    %v254 = vadd.f32 %v237, %v249
    %v255 = vadd.f32 %v238, %v249
    %v256 = vadd.f32 %v239, %v249
    %v257 = vadd.f32 %v240, %v249
    %v258 = vadd.f32 %v241, %v249
    %v259 = vadd.f32 %v242, %v249
    %v260 = vadd.f32 %v243, %v249
    %v261 = vadd.f32 %v244, %v249
    %v262 = vadd.f32 %v245, %v249
    %v263 = vadd.f32 %v246, %v249
    %v264 = vadd.f32 %v247, %v249
    %v265 = vadd.f32 %v248, %v249
    %v266 = vmax.f32 %v250, 0.0
    %v267 = vmax.f32 %v251, 0.0
    %v268 = vmax.f32 %v252, 0.0
    %v269 = vmax.f32 %v253, 0.0
    %v270 = vmax.f32 %v254, 0.0
    %v271 = vmax.f32 %v255, 0.0
    %v272 = vmax.f32 %v256, 0.0
    %v273 = vmax.f32 %v257, 0.0
    %v274 = vmax.f32 %v258, 0.0
    %v275 = vmax.f32 %v259, 0.0
    %v276 = vmax.f32 %v260, 0.0
    %v277 = vmax.f32 %v261, 0.0
    %v278 = vmax.f32 %v262, 0.0
    %v279 = vmax.f32 %v263, 0.0
    %v280 = vmax.f32 %v264, 0.0
    %v281 = vmax.f32 %v265, 0.0
    %v282 = vmul.f32 %v166, %v98
    %v283 = vmul.f32 %v166, %v99
    %v284 = vmul.f32 %v166, %v100
    %v285 = vmul.f32 %v166, %v101
    %v286 = vmul.f32 %v166, %v102
    %v287 = vmul.f32 %v166, %v103
    %v288 = vmul.f32 %v166, %v104
    %v289 = vmul.f32 %v166, %v105
    %v290 = vmul.f32 %v166, %v106
    %v291 = vmul.f32 %v166, %v107
    %v292 = vmul.f32 %v166, %v108
    %v293 = vmul.f32 %v166, %v109
    %v294 = vmul.f32 %v166, %v110
    %v295 = vmul.f32 %v166, %v111
    %v296 = vmul.f32 %v166, %v112
    %v297 = vmul.f32 %v166, %v113
    %v298 = vmul.f32 %v183, %v122
    %v299 = vmul.f32 %v183, %v123
    %v300 = vmul.f32 %v183, %v124
    %v301 = vmul.f32 %v183, %v125
    %v302 = vmul.f32 %v183, %v126
    %v303 = vmul.f32 %v183, %v127
    %v304 = vmul.f32 %v183, %v128
    %v305 = vmul.f32 %v183, %v129
    %v306 = vmul.f32 %v183, %v130
    %v307 = vmul.f32 %v183, %v131
    %v308 = vmul.f32 %v183, %v132
    %v309 = vmul.f32 %v183, %v133
    %v310 = vmul.f32 %v183, %v134
    %v311 = vmul.f32 %v183, %v135
    %v312 = vmul.f32 %v183, %v136
    %v313 = vmul.f32 %v183, %v137
    %v314 = vadd.f32 %v282, %v298
    %v315 = vadd.f32 %v283, %v299
    %v316 = vadd.f32 %v284, %v300
    %v317 = vadd.f32 %v285, %v301
    %v318 = vadd.f32 %v286, %v302
    %v319 = vadd.f32 %v287, %v303
    %v320 = vadd.f32 %v288, %v304
    %v321 = vadd.f32 %v289, %v305
    %v322 = vadd.f32 %v290, %v306
    %v323 = vadd.f32 %v291, %v307
    %v324 = vadd.f32 %v292, %v308
    %v325 = vadd.f32 %v293, %v309
    %v326 = vadd.f32 %v294, %v310
    %v327 = vadd.f32 %v295, %v311
    %v328 = vadd.f32 %v296, %v312
    %v329 = vadd.f32 %v297, %v313
    %v330 = vmul.f32 %v216, %v146
    %v331 = vmul.f32 %v216, %v147
    %v332 = vmul.f32 %v216, %v148
    %v333 = vmul.f32 %v216, %v149
    %v334 = vmul.f32 %v216, %v150
    %v335 = vmul.f32 %v216, %v151
    %v336 = vmul.f32 %v216, %v152
    %v337 = vmul.f32 %v216, %v153
    %v338 = vmul.f32 %v216, %v154
    %v339 = vmul.f32 %v216, %v155
    %v340 = vmul.f32 %v216, %v156
    %v341 = vmul.f32 %v216, %v157
    %v342 = vmul.f32 %v216, %v158
    %v343 = vmul.f32 %v216, %v159
    %v344 = vmul.f32 %v216, %v160
    %v345 = vmul.f32 %v216, %v161
    %v346 = vadd.f32 %v314, %v330
    %v347 = vadd.f32 %v315, %v331
    %v348 = vadd.f32 %v316, %v332
    %v349 = vadd.f32 %v317, %v333
    %v350 = vadd.f32 %v318, %v334
    %v351 = vadd.f32 %v319, %v335
    %v352 = vadd.f32 %v320, %v336
    %v353 = vadd.f32 %v321, %v337
    %v354 = vadd.f32 %v322, %v338
    %v355 = vadd.f32 %v323, %v339
    %v356 = vadd.f32 %v324, %v340
    %v357 = vadd.f32 %v325, %v341
    %v358 = vadd.f32 %v326, %v342
    %v359 = vadd.f32 %v327, %v343
    %v360 = vadd.f32 %v328, %v344
    %v361 = vadd.f32 %v329, %v345
    %v362 = vadd.f32 %v346, %v249
    %v363 = vadd.f32 %v347, %v249
    %v364 = vadd.f32 %v348, %v249
    %v365 = vadd.f32 %v349, %v249
    %v366 = vadd.f32 %v350, %v249
    %v367 = vadd.f32 %v351, %v249
    %v368 = vadd.f32 %v352, %v249
    %v369 = vadd.f32 %v353, %v249
    %v370 = vadd.f32 %v354, %v249
    %v371 = vadd.f32 %v355, %v249
    %v372 = vadd.f32 %v356, %v249
    %v373 = vadd.f32 %v357, %v249
    %v374 = vadd.f32 %v358, %v249
    %v375 = vadd.f32 %v359, %v249
    %v376 = vadd.f32 %v360, %v249
    %v377 = vadd.f32 %v361, %v249
    %v378 = vmax.f32 %v362, 0.0
    %v379 = vmax.f32 %v363, 0.0
    %v380 = vmax.f32 %v364, 0.0
    %v381 = vmax.f32 %v365, 0.0
    %v382 = vmax.f32 %v366, 0.0
    %v383 = vmax.f32 %v367, 0.0
    %v384 = vmax.f32 %v368, 0.0
    %v385 = vmax.f32 %v369, 0.0
    %v386 = vmax.f32 %v370, 0.0
    %v387 = vmax.f32 %v371, 0.0
    %v388 = vmax.f32 %v372, 0.0
    %v389 = vmax.f32 %v373, 0.0
    %v390 = vmax.f32 %v374, 0.0
    %v391 = vmax.f32 %v375, 0.0
    %v392 = vmax.f32 %v376, 0.0
    %v393 = vmax.f32 %v377, 0.0
    %s394 = sld [smem:[#allocation3 + $0x3]]
    %s395 = sld [smem:[#allocation3 + $0x4]]
    %s396 = sld [smem:[#allocation3 + $0x5]]
    %s397 = sld [smem:[#allocation5 + $0x1]]
    %v398 = vstv %s394
    %v399 = vmul.f32 %v398, %v74
    %v400 = vmul.f32 %v398, %v75
    %v401 = vmul.f32 %v398, %v76
    %v402 = vmul.f32 %v398, %v77
    %v403 = vmul.f32 %v398, %v78
    %v404 = vmul.f32 %v398, %v79
    %v405 = vmul.f32 %v398, %v80
    %v406 = vmul.f32 %v398, %v81
    %v407 = vmul.f32 %v398, %v82
    %v408 = vmul.f32 %v398, %v83
    %v409 = vmul.f32 %v398, %v84
    %v410 = vmul.f32 %v398, %v85
    %v411 = vmul.f32 %v398, %v86
    %v412 = vmul.f32 %v398, %v87
    %v413 = vmul.f32 %v398, %v88
    %v414 = vmul.f32 %v398, %v89
    %v415 = vstv %s395
    %v416 = vmul.f32 %v415, %v98
    %v417 = vmul.f32 %v415, %v99
    %v418 = vmul.f32 %v415, %v100
    %v419 = vmul.f32 %v415, %v101
    %v420 = vmul.f32 %v415, %v102
    %v421 = vmul.f32 %v415, %v103
    %v422 = vmul.f32 %v415, %v104
    %v423 = vmul.f32 %v415, %v105
    %v424 = vmul.f32 %v415, %v106
    %v425 = vmul.f32 %v415, %v107
    %v426 = vmul.f32 %v415, %v108
    %v427 = vmul.f32 %v415, %v109
    %v428 = vmul.f32 %v415, %v110
    %v429 = vmul.f32 %v415, %v111
    %v430 = vmul.f32 %v415, %v112
    %v431 = vmul.f32 %v415, %v113
    %v432 = vadd.f32 %v399, %v416
    %v433 = vadd.f32 %v400, %v417
    %v434 = vadd.f32 %v401, %v418
    %v435 = vadd.f32 %v402, %v419
    %v436 = vadd.f32 %v403, %v420
    %v437 = vadd.f32 %v404, %v421
    %v438 = vadd.f32 %v405, %v422
    %v439 = vadd.f32 %v406, %v423
    %v440 = vadd.f32 %v407, %v424
    %v441 = vadd.f32 %v408, %v425
    %v442 = vadd.f32 %v409, %v426
    %v443 = vadd.f32 %v410, %v427
    %v444 = vadd.f32 %v411, %v428
    %v445 = vadd.f32 %v412, %v429
    %v446 = vadd.f32 %v413, %v430
    %v447 = vadd.f32 %v414, %v431
    %v448 = vstv %s396
    %v449 = vmul.f32 %v448, %v122
    %v450 = vmul.f32 %v448, %v123
    %v451 = vmul.f32 %v448, %v124
    %v452 = vmul.f32 %v448, %v125
    %v453 = vmul.f32 %v448, %v126
    %v454 = vmul.f32 %v448, %v127
    %v455 = vmul.f32 %v448, %v128
    %v456 = vmul.f32 %v448, %v129
    %v457 = vmul.f32 %v448, %v130
    %v458 = vmul.f32 %v448, %v131
    %v459 = vmul.f32 %v448, %v132
    %v460 = vmul.f32 %v448, %v133
    %v461 = vmul.f32 %v448, %v134
    %v462 = vmul.f32 %v448, %v135
    %v463 = vmul.f32 %v448, %v136
    %v464 = vmul.f32 %v448, %v137
    %v465 = vadd.f32 %v432, %v449
    %v466 = vadd.f32 %v433, %v450
    %v467 = vadd.f32 %v434, %v451
    %v468 = vadd.f32 %v435, %v452
    %v469 = vadd.f32 %v436, %v453
    %v470 = vadd.f32 %v437, %v454
    %v471 = vadd.f32 %v438, %v455
    %v472 = vadd.f32 %v439, %v456
    %v473 = vadd.f32 %v440, %v457
    %v474 = vadd.f32 %v441, %v458
    %v475 = vadd.f32 %v442, %v459
    %v476 = vadd.f32 %v443, %v460
    %v477 = vadd.f32 %v444, %v461
    %v478 = vadd.f32 %v445, %v462
    %v479 = vadd.f32 %v446, %v463
    %v480 = vadd.f32 %v447, %v464
    %v481 = vstv %s397
    %v482 = vadd.f32 %v465, %v481
    %v483 = vadd.f32 %v466, %v481
    %v484 = vadd.f32 %v467, %v481
    %v485 = vadd.f32 %v468, %v481
    %v486 = vadd.f32 %v469, %v481
    %v487 = vadd.f32 %v470, %v481
    %v488 = vadd.f32 %v471, %v481
    %v489 = vadd.f32 %v472, %v481
    %v490 = vadd.f32 %v473, %v481
    %v491 = vadd.f32 %v474, %v481
    %v492 = vadd.f32 %v475, %v481
    %v493 = vadd.f32 %v476, %v481
    %v494 = vadd.f32 %v477, %v481
    %v495 = vadd.f32 %v478, %v481
    %v496 = vadd.f32 %v479, %v481
    %v497 = vadd.f32 %v480, %v481
    %v498 = vmax.f32 %v482, 0.0
    %v499 = vmax.f32 %v483, 0.0
    %v500 = vmax.f32 %v484, 0.0
    %v501 = vmax.f32 %v485, 0.0
    %v502 = vmax.f32 %v486, 0.0
    %v503 = vmax.f32 %v487, 0.0
    %v504 = vmax.f32 %v488, 0.0
    %v505 = vmax.f32 %v489, 0.0
    %v506 = vmax.f32 %v490, 0.0
    %v507 = vmax.f32 %v491, 0.0
    %v508 = vmax.f32 %v492, 0.0
    %v509 = vmax.f32 %v493, 0.0
    %v510 = vmax.f32 %v494, 0.0
    %v511 = vmax.f32 %v495, 0.0
    %v512 = vmax.f32 %v496, 0.0
    %v513 = vmax.f32 %v497, 0.0
    %v514 = vmul.f32 %v398, %v98
    %v515 = vmul.f32 %v398, %v99
    %v516 = vmul.f32 %v398, %v100
    %v517 = vmul.f32 %v398, %v101
    %v518 = vmul.f32 %v398, %v102
    %v519 = vmul.f32 %v398, %v103
    %v520 = vmul.f32 %v398, %v104
    %v521 = vmul.f32 %v398, %v105
    %v522 = vmul.f32 %v398, %v106
    %v523 = vmul.f32 %v398, %v107
    %v524 = vmul.f32 %v398, %v108
    %v525 = vmul.f32 %v398, %v109
    %v526 = vmul.f32 %v398, %v110
    %v527 = vmul.f32 %v398, %v111
    %v528 = vmul.f32 %v398, %v112
    %v529 = vmul.f32 %v398, %v113
    %v530 = vmul.f32 %v415, %v122
    %v531 = vmul.f32 %v415, %v123
    %v532 = vmul.f32 %v415, %v124
    %v533 = vmul.f32 %v415, %v125
    %v534 = vmul.f32 %v415, %v126
    %v535 = vmul.f32 %v415, %v127
    %v536 = vmul.f32 %v415, %v128
    %v537 = vmul.f32 %v415, %v129
    %v538 = vmul.f32 %v415, %v130
    %v539 = vmul.f32 %v415, %v131
    %v540 = vmul.f32 %v415, %v132
    %v541 = vmul.f32 %v415, %v133
    %v542 = vmul.f32 %v415, %v134
    %v543 = vmul.f32 %v415, %v135
    %v544 = vmul.f32 %v415, %v136
    %v545 = vmul.f32 %v415, %v137
    %v546 = vadd.f32 %v514, %v530
    %v547 = vadd.f32 %v515, %v531
    %v548 = vadd.f32 %v516, %v532
    %v549 = vadd.f32 %v517, %v533
    %v550 = vadd.f32 %v518, %v534
    %v551 = vadd.f32 %v519, %v535
    %v552 = vadd.f32 %v520, %v536
    %v553 = vadd.f32 %v521, %v537
    %v554 = vadd.f32 %v522, %v538
    %v555 = vadd.f32 %v523, %v539
    %v556 = vadd.f32 %v524, %v540
    %v557 = vadd.f32 %v525, %v541
    %v558 = vadd.f32 %v526, %v542
    %v559 = vadd.f32 %v527, %v543
    %v560 = vadd.f32 %v528, %v544
    %v561 = vadd.f32 %v529, %v545
    %v562 = vmul.f32 %v448, %v146
    %v563 = vmul.f32 %v448, %v147
    %v564 = vmul.f32 %v448, %v148
    %v565 = vmul.f32 %v448, %v149
    %v566 = vmul.f32 %v448, %v150
    %v567 = vmul.f32 %v448, %v151
    %v568 = vmul.f32 %v448, %v152
    %v569 = vmul.f32 %v448, %v153
    %v570 = vmul.f32 %v448, %v154
    %v571 = vmul.f32 %v448, %v155
    %v572 = vmul.f32 %v448, %v156
    %v573 = vmul.f32 %v448, %v157
    %v574 = vmul.f32 %v448, %v158
    %v575 = vmul.f32 %v448, %v159
    %v576 = vmul.f32 %v448, %v160
    %v577 = vmul.f32 %v448, %v161
    %v578 = vadd.f32 %v546, %v562
    %v579 = vadd.f32 %v547, %v563
    %v580 = vadd.f32 %v548, %v564
    %v581 = vadd.f32 %v549, %v565
    %v582 = vadd.f32 %v550, %v566
    %v583 = vadd.f32 %v551, %v567
    %v584 = vadd.f32 %v552, %v568
    %v585 = vadd.f32 %v553, %v569
    %v586 = vadd.f32 %v554, %v570
    %v587 = vadd.f32 %v555, %v571
    %v588 = vadd.f32 %v556, %v572
    %v589 = vadd.f32 %v557, %v573
    %v590 = vadd.f32 %v558, %v574
    %v591 = vadd.f32 %v559, %v575
    %v592 = vadd.f32 %v560, %v576
    %v593 = vadd.f32 %v561, %v577
    %v594 = vadd.f32 %v578, %v481
    %v595 = vadd.f32 %v579, %v481
    %v596 = vadd.f32 %v580, %v481
    %v597 = vadd.f32 %v581, %v481
    %v598 = vadd.f32 %v582, %v481
    %v599 = vadd.f32 %v583, %v481
    %v600 = vadd.f32 %v584, %v481
    %v601 = vadd.f32 %v585, %v481
    %v602 = vadd.f32 %v586, %v481
    %v603 = vadd.f32 %v587, %v481
    %v604 = vadd.f32 %v588, %v481
    %v605 = vadd.f32 %v589, %v481
    %v606 = vadd.f32 %v590, %v481
    %v607 = vadd.f32 %v591, %v481
    %v608 = vadd.f32 %v592, %v481
    %v609 = vadd.f32 %v593, %v481
    %v610 = vmax.f32 %v594, 0.0
    %v611 = vmax.f32 %v595, 0.0
    %v612 = vmax.f32 %v596, 0.0
    %v613 = vmax.f32 %v597, 0.0
    %v614 = vmax.f32 %v598, 0.0
    %v615 = vmax.f32 %v599, 0.0
    %v616 = vmax.f32 %v600, 0.0
    %v617 = vmax.f32 %v601, 0.0
    %v618 = vmax.f32 %v602, 0.0
    %v619 = vmax.f32 %v603, 0.0
    %v620 = vmax.f32 %v604, 0.0
    %v621 = vmax.f32 %v605, 0.0
    %v622 = vmax.f32 %v606, 0.0
    %v623 = vmax.f32 %v607, 0.0
    %v624 = vmax.f32 %v608, 0.0
    %v625 = vmax.f32 %v609, 0.0
    %s626 = sld [smem:[#allocation3 + $0x6]]
    %s627 = sld [smem:[#allocation3 + $0x7]]
    %s628 = sld [smem:[#allocation3 + $0x8]]
    %s629 = sld [smem:[#allocation5 + $0x2]]
    %v630 = vstv %s626
    %v631 = vmul.f32 %v630, %v74
    %v632 = vmul.f32 %v630, %v75
    %v633 = vmul.f32 %v630, %v76
    %v634 = vmul.f32 %v630, %v77
    %v635 = vmul.f32 %v630, %v78
    %v636 = vmul.f32 %v630, %v79
    %v637 = vmul.f32 %v630, %v80
    %v638 = vmul.f32 %v630, %v81
    %v639 = vmul.f32 %v630, %v82
    %v640 = vmul.f32 %v630, %v83
    %v641 = vmul.f32 %v630, %v84
    %v642 = vmul.f32 %v630, %v85
    %v643 = vmul.f32 %v630, %v86
    %v644 = vmul.f32 %v630, %v87
    %v645 = vmul.f32 %v630, %v88
    %v646 = vmul.f32 %v630, %v89
    %v647 = vstv %s627
    %v648 = vmul.f32 %v647, %v98
    %v649 = vmul.f32 %v647, %v99
    %v650 = vmul.f32 %v647, %v100
    %v651 = vmul.f32 %v647, %v101
    %v652 = vmul.f32 %v647, %v102
    %v653 = vmul.f32 %v647, %v103
    %v654 = vmul.f32 %v647, %v104
    %v655 = vmul.f32 %v647, %v105
    %v656 = vmul.f32 %v647, %v106
    %v657 = vmul.f32 %v647, %v107
    %v658 = vmul.f32 %v647, %v108
    %v659 = vmul.f32 %v647, %v109
    %v660 = vmul.f32 %v647, %v110
    %v661 = vmul.f32 %v647, %v111
    %v662 = vmul.f32 %v647, %v112
    %v663 = vmul.f32 %v647, %v113
    %v664 = vadd.f32 %v631, %v648
    %v665 = vadd.f32 %v632, %v649
    %v666 = vadd.f32 %v633, %v650
    %v667 = vadd.f32 %v634, %v651
    %v668 = vadd.f32 %v635, %v652
    %v669 = vadd.f32 %v636, %v653
    %v670 = vadd.f32 %v637, %v654
    %v671 = vadd.f32 %v638, %v655
    %v672 = vadd.f32 %v639, %v656
    %v673 = vadd.f32 %v640, %v657
    %v674 = vadd.f32 %v641, %v658
    %v675 = vadd.f32 %v642, %v659
    %v676 = vadd.f32 %v643, %v660
    %v677 = vadd.f32 %v644, %v661
    %v678 = vadd.f32 %v645, %v662
    %v679 = vadd.f32 %v646, %v663
    %v680 = vstv %s628
    %v681 = vmul.f32 %v680, %v122
    %v682 = vmul.f32 %v680, %v123
    %v683 = vmul.f32 %v680, %v124
    %v684 = vmul.f32 %v680, %v125
    %v685 = vmul.f32 %v680, %v126
    %v686 = vmul.f32 %v680, %v127
    %v687 = vmul.f32 %v680, %v128
    %v688 = vmul.f32 %v680, %v129
    %v689 = vmul.f32 %v680, %v130
    %v690 = vmul.f32 %v680, %v131
    %v691 = vmul.f32 %v680, %v132
    %v692 = vmul.f32 %v680, %v133
    %v693 = vmul.f32 %v680, %v134
    %v694 = vmul.f32 %v680, %v135
    %v695 = vmul.f32 %v680, %v136
    %v696 = vmul.f32 %v680, %v137
    %v697 = vadd.f32 %v664, %v681
    %v698 = vadd.f32 %v665, %v682
    %v699 = vadd.f32 %v666, %v683
    %v700 = vadd.f32 %v667, %v684
    %v701 = vadd.f32 %v668, %v685
    %v702 = vadd.f32 %v669, %v686
    %v703 = vadd.f32 %v670, %v687
    %v704 = vadd.f32 %v671, %v688
    %v705 = vadd.f32 %v672, %v689
    %v706 = vadd.f32 %v673, %v690
    %v707 = vadd.f32 %v674, %v691
    %v708 = vadd.f32 %v675, %v692
    %v709 = vadd.f32 %v676, %v693
    %v710 = vadd.f32 %v677, %v694
    %v711 = vadd.f32 %v678, %v695
    %v712 = vadd.f32 %v679, %v696
    %v713 = vstv %s629
    %v714 = vadd.f32 %v697, %v713
    %v715 = vadd.f32 %v698, %v713
    %v716 = vadd.f32 %v699, %v713
    %v717 = vadd.f32 %v700, %v713
    %v718 = vadd.f32 %v701, %v713
    %v719 = vadd.f32 %v702, %v713
    %v720 = vadd.f32 %v703, %v713
    %v721 = vadd.f32 %v704, %v713
    %v722 = vadd.f32 %v705, %v713
    %v723 = vadd.f32 %v706, %v713
    %v724 = vadd.f32 %v707, %v713
    %v725 = vadd.f32 %v708, %v713
    %v726 = vadd.f32 %v709, %v713
    %v727 = vadd.f32 %v710, %v713
    %v728 = vadd.f32 %v711, %v713
    %v729 = vadd.f32 %v712, %v713
    %v730 = vmax.f32 %v714, 0.0
    %v731 = vmax.f32 %v715, 0.0
    %v732 = vmax.f32 %v716, 0.0
    %v733 = vmax.f32 %v717, 0.0
    %v734 = vmax.f32 %v718, 0.0
    %v735 = vmax.f32 %v719, 0.0
    %v736 = vmax.f32 %v720, 0.0
    %v737 = vmax.f32 %v721, 0.0
    %v738 = vmax.f32 %v722, 0.0
    %v739 = vmax.f32 %v723, 0.0
    %v740 = vmax.f32 %v724, 0.0
    %v741 = vmax.f32 %v725, 0.0
    %v742 = vmax.f32 %v726, 0.0
    %v743 = vmax.f32 %v727, 0.0
    %v744 = vmax.f32 %v728, 0.0
    %v745 = vmax.f32 %v729, 0.0
    %v746 = vmul.f32 %v630, %v98
    %v747 = vmul.f32 %v630, %v99
    %v748 = vmul.f32 %v630, %v100
    %v749 = vmul.f32 %v630, %v101
    %v750 = vmul.f32 %v630, %v102
    %v751 = vmul.f32 %v630, %v103
    %v752 = vmul.f32 %v630, %v104
    %v753 = vmul.f32 %v630, %v105
    %v754 = vmul.f32 %v630, %v106
    %v755 = vmul.f32 %v630, %v107
    %v756 = vmul.f32 %v630, %v108
    %v757 = vmul.f32 %v630, %v109
    %v758 = vmul.f32 %v630, %v110
    %v759 = vmul.f32 %v630, %v111
    %v760 = vmul.f32 %v630, %v112
    %v761 = vmul.f32 %v630, %v113
    %v762 = vmul.f32 %v647, %v122
    %v763 = vmul.f32 %v647, %v123
    %v764 = vmul.f32 %v647, %v124
    %v765 = vmul.f32 %v647, %v125
    %v766 = vmul.f32 %v647, %v126
    %v767 = vmul.f32 %v647, %v127
    %v768 = vmul.f32 %v647, %v128
    %v769 = vmul.f32 %v647, %v129
    %v770 = vmul.f32 %v647, %v130
    %v771 = vmul.f32 %v647, %v131
    %v772 = vmul.f32 %v647, %v132
    %v773 = vmul.f32 %v647, %v133
    %v774 = vmul.f32 %v647, %v134
    %v775 = vmul.f32 %v647, %v135
    %v776 = vmul.f32 %v647, %v136
    %v777 = vmul.f32 %v647, %v137
    %v778 = vadd.f32 %v746, %v762
    %v779 = vadd.f32 %v747, %v763
    %v780 = vadd.f32 %v748, %v764
    %v781 = vadd.f32 %v749, %v765
    %v782 = vadd.f32 %v750, %v766
    %v783 = vadd.f32 %v751, %v767
    %v784 = vadd.f32 %v752, %v768
    %v785 = vadd.f32 %v753, %v769
    %v786 = vadd.f32 %v754, %v770
    %v787 = vadd.f32 %v755, %v771
    %v788 = vadd.f32 %v756, %v772
    %v789 = vadd.f32 %v757, %v773
    %v790 = vadd.f32 %v758, %v774
    %v791 = vadd.f32 %v759, %v775
    %v792 = vadd.f32 %v760, %v776
    %v793 = vadd.f32 %v761, %v777
    %v794 = vmul.f32 %v680, %v146
    %v795 = vmul.f32 %v680, %v147
    %v796 = vmul.f32 %v680, %v148
    %v797 = vmul.f32 %v680, %v149
    %v798 = vmul.f32 %v680, %v150
    %v799 = vmul.f32 %v680, %v151
    %v800 = vmul.f32 %v680, %v152
    %v801 = vmul.f32 %v680, %v153
    %v802 = vmul.f32 %v680, %v154
    %v803 = vmul.f32 %v680, %v155
    %v804 = vmul.f32 %v680, %v156
    %v805 = vmul.f32 %v680, %v157
    %v806 = vmul.f32 %v680, %v158
    %v807 = vmul.f32 %v680, %v159
    %v808 = vmul.f32 %v680, %v160
    %v809 = vmul.f32 %v680, %v161
    %v810 = vadd.f32 %v778, %v794
    %v811 = vadd.f32 %v779, %v795
    %v812 = vadd.f32 %v780, %v796
    %v813 = vadd.f32 %v781, %v797
    %v814 = vadd.f32 %v782, %v798
    %v815 = vadd.f32 %v783, %v799
    %v816 = vadd.f32 %v784, %v800
    %v817 = vadd.f32 %v785, %v801
    %v818 = vadd.f32 %v786, %v802
    %v819 = vadd.f32 %v787, %v803
    %v820 = vadd.f32 %v788, %v804
    %v821 = vadd.f32 %v789, %v805
    %v822 = vadd.f32 %v790, %v806
    %v823 = vadd.f32 %v791, %v807
    %v824 = vadd.f32 %v792, %v808
    %v825 = vadd.f32 %v793, %v809
    %v826 = vadd.f32 %v810, %v713
    %v827 = vadd.f32 %v811, %v713
    %v828 = vadd.f32 %v812, %v713
    %v829 = vadd.f32 %v813, %v713
    %v830 = vadd.f32 %v814, %v713
    %v831 = vadd.f32 %v815, %v713
    %v832 = vadd.f32 %v816, %v713
    %v833 = vadd.f32 %v817, %v713
    %v834 = vadd.f32 %v818, %v713
    %v835 = vadd.f32 %v819, %v713
    %v836 = vadd.f32 %v820, %v713
    %v837 = vadd.f32 %v821, %v713
    %v838 = vadd.f32 %v822, %v713
    %v839 = vadd.f32 %v823, %v713
    %v840 = vadd.f32 %v824, %v713
    %v841 = vadd.f32 %v825, %v713
    %v842 = vmax.f32 %v826, 0.0
    %v843 = vmax.f32 %v827, 0.0
    %v844 = vmax.f32 %v828, 0.0
    %v845 = vmax.f32 %v829, 0.0
    %v846 = vmax.f32 %v830, 0.0
    %v847 = vmax.f32 %v831, 0.0
    %v848 = vmax.f32 %v832, 0.0
    %v849 = vmax.f32 %v833, 0.0
    %v850 = vmax.f32 %v834, 0.0
    %v851 = vmax.f32 %v835, 0.0
    %v852 = vmax.f32 %v836, 0.0
    %v853 = vmax.f32 %v837, 0.0
    %v854 = vmax.f32 %v838, 0.0
    %v855 = vmax.f32 %v839, 0.0
    %v856 = vmax.f32 %v840, 0.0
    %v857 = vmax.f32 %v841, 0.0
    %v858 = vld [vmem:[%s3] sm:$0xff]
    %v859 = vld [vmem:[%s3 + $0x8] sm:$0xf]
    %v860 = vld [vmem:[%s3 + $0xc] sm:$0xff]
    %v861 = vld [vmem:[%s3 + $0x14] sm:$0xf]
    %v862 = vld [vmem:[%s3 + $0x18] sm:$0xff]
    %v863 = vld [vmem:[%s3 + $0x20] sm:$0xf]
    %v864 = vld [vmem:[%s3 + $0x24] sm:$0xff]
    %v865 = vld [vmem:[%s3 + $0x2c] sm:$0xf]
    %v866 = vld [vmem:[%s3 + $0x30] sm:$0xff]
    %v867 = vld [vmem:[%s3 + $0x38] sm:$0xf]
    %v868 = vld [vmem:[%s3 + $0x3c] sm:$0xff]
    %v869 = vld [vmem:[%s3 + $0x44] sm:$0xf]
    %v870 = vld [vmem:[%s3 + $0x48] sm:$0xff]
    %v871 = vld [vmem:[%s3 + $0x50] sm:$0xf]
    %v872 = vld [vmem:[%s3 + $0x54] sm:$0xff]
    %v873 = vld [vmem:[%s3 + $0x5c] sm:$0xf]
    %v874 = vld [vmem:[%s3 + $0x60] sm:$0xff]
    %v875 = vld [vmem:[%s3 + $0x68] sm:$0xf]
    %v876 = vld [vmem:[%s3 + $0x6c] sm:$0xff]
    %v877 = vld [vmem:[%s3 + $0x74] sm:$0xf]
    %v878 = vld [vmem:[%s3 + $0x78] sm:$0xff]
    %v879 = vld [vmem:[%s3 + $0x80] sm:$0xf]
    %v880 = vld [vmem:[%s3 + $0x84] sm:$0xff]
    %v881 = vld [vmem:[%s3 + $0x8c] sm:$0xf]
    %v882 = vld [vmem:[%s3 + $0x90] sm:$0xff]
    %v883 = vld [vmem:[%s3 + $0x98] sm:$0xf]
    %v884 = vld [vmem:[%s3 + $0x9c] sm:$0xff]
    %v885 = vld [vmem:[%s3 + $0xa4] sm:$0xf]
    %v886 = vld [vmem:[%s3 + $0xa8] sm:$0xff]
    %v887 = vld [vmem:[%s3 + $0xb0] sm:$0xf]
    %v888 = vld [vmem:[%s3 + $0xb4] sm:$0xff]
    %v889 = vld [vmem:[%s3 + $0xbc] sm:$0xf]
    %v890 = vld [vmem:[%s3 + $0xc0] sm:$0xff]
    %v891 = vld [vmem:[%s3 + $0xc8] sm:$0xf]
    %v892 = vld [vmem:[%s3 + $0xcc] sm:$0xff]
    %v893 = vld [vmem:[%s3 + $0xd4] sm:$0xf]
    %v894 = vld [vmem:[%s3 + $0xd8] sm:$0xff]
    %v895 = vld [vmem:[%s3 + $0xe0] sm:$0xf]
    %v896 = vld [vmem:[%s3 + $0xe4] sm:$0xff]
    %v897 = vld [vmem:[%s3 + $0xec] sm:$0xf]
    %v898 = vld [vmem:[%s3 + $0xf0] sm:$0xff]
    %v899 = vld [vmem:[%s3 + $0xf8] sm:$0xf]
    %v900 = vld [vmem:[%s3 + $0xfc] sm:$0xff]
    %v901 = vld [vmem:[%s3 + $0x104] sm:$0xf]
    %v902 = vld [vmem:[%s3 + $0x108] sm:$0xff]
    %v903 = vld [vmem:[%s3 + $0x110] sm:$0xf]
    %v904 = vld [vmem:[%s3 + $0x114] sm:$0xff]
    %v905 = vld [vmem:[%s3 + $0x11c] sm:$0xf]
    %v906 = vld [vmem:[%s3 + $0x120] sm:$0xff]
    %v907 = vld [vmem:[%s3 + $0x128] sm:$0xf]
    %v908 = vld [vmem:[%s3 + $0x12c] sm:$0xff]
    %v909 = vld [vmem:[%s3 + $0x134] sm:$0xf]
    %v910 = vld [vmem:[%s3 + $0x138] sm:$0xff]
    %v911 = vld [vmem:[%s3 + $0x140] sm:$0xf]
    %v912 = vld [vmem:[%s3 + $0x144] sm:$0xff]
    %v913 = vld [vmem:[%s3 + $0x14c] sm:$0xf]
    %v914 = vld [vmem:[%s3 + $0x150] sm:$0xff]
    %v915 = vld [vmem:[%s3 + $0x158] sm:$0xf]
    %v916 = vld [vmem:[%s3 + $0x15c] sm:$0xff]
    %v917 = vld [vmem:[%s3 + $0x164] sm:$0xf]
    %v918 = vld [vmem:[%s3 + $0x168] sm:$0xff]
    %v919 = vld [vmem:[%s3 + $0x170] sm:$0xf]
    %v920 = vld [vmem:[%s3 + $0x174] sm:$0x11]
    %v921 = vld [vmem:[%s3 + $0x17c] sm:$0x1]
    %v922 = vpack.c.bf16 %v268, %v266
    %v923 = vpack.c.bf16 %v269, %v267
    %v924 = vpack.c.bf16 %v272, %v270
    %v925 = vpack.c.bf16 %v273, %v271
    %v926 = vpack.c.bf16 %v276, %v274
    %v927 = vpack.c.bf16 %v277, %v275
    %v928 = vpack.c.bf16 %v280, %v278
    %v929 = vpack.c.bf16 %v281, %v279
    %v930 = vpack.c.bf16 %v380, %v378
    %v931 = vpack.c.bf16 %v381, %v379
    %v932 = vpack.c.bf16 %v384, %v382
    %v933 = vpack.c.bf16 %v385, %v383
    %v934 = vpack.c.bf16 %v388, %v386
    %v935 = vpack.c.bf16 %v389, %v387
    %v936 = vpack.c.bf16 %v392, %v390
    %v937 = vpack.c.bf16 %v393, %v391
    %v938 = vpack.c.bf16 %v500, %v498
    %v939 = vpack.c.bf16 %v501, %v499
    %v940 = vpack.c.bf16 %v504, %v502
    %v941 = vpack.c.bf16 %v505, %v503
    %v942 = vpack.c.bf16 %v508, %v506
    %v943 = vpack.c.bf16 %v509, %v507
    %v944 = vpack.c.bf16 %v512, %v510
    %v945 = vpack.c.bf16 %v513, %v511
    %v946 = vpack.c.bf16 %v612, %v610
    %v947 = vpack.c.bf16 %v613, %v611
    %v948 = vpack.c.bf16 %v616, %v614
    %v949 = vpack.c.bf16 %v617, %v615
    %v950 = vpack.c.bf16 %v620, %v618
    %v951 = vpack.c.bf16 %v621, %v619
    %v952 = vpack.c.bf16 %v624, %v622
    %v953 = vpack.c.bf16 %v625, %v623
    %v954 = vpack.c.bf16 %v732, %v730
    %v955 = vpack.c.bf16 %v733, %v731
    %v956 = vpack.c.bf16 %v736, %v734
    %v957 = vpack.c.bf16 %v737, %v735
    %v958 = vpack.c.bf16 %v740, %v738
    %v959 = vpack.c.bf16 %v741, %v739
    %v960 = vpack.c.bf16 %v744, %v742
    %v961 = vpack.c.bf16 %v745, %v743
    %v962 = vpack.c.bf16 %v844, %v842
    %v963 = vpack.c.bf16 %v845, %v843
    %v964 = vpack.c.bf16 %v848, %v846
    %v965 = vpack.c.bf16 %v849, %v847
    %v966 = vpack.c.bf16 %v852, %v850
    %v967 = vpack.c.bf16 %v853, %v851
    %v968 = vpack.c.bf16 %v856, %v854
    %v969 = vpack.c.bf16 %v857, %v855
    %v970 = vld [vmem:[%s4] sm:$0xff]
    %v971 = vld [vmem:[%s4 + $0x8] sm:$0xff]
    %v972 = vld [vmem:[%s4 + $0x10] sm:$0xff]
    %v973 = vld [vmem:[%s4 + $0x18] sm:$0xff]
    %v974 = vld [vmem:[%s4 + $0x20] sm:$0xff]
    %v975 = vld [vmem:[%s4 + $0x28] sm:$0xff]
    %v976 = vld [vmem:[%s4 + $0x30] sm:$0xff]
    %v977 = vld [vmem:[%s4 + $0x38] sm:$0xff]
    %v978 = vld [vmem:[%s4 + $0x40] sm:$0xff]
    %v979 = vld [vmem:[%s4 + $0x48] sm:$0xff]
    %v980 = vld [vmem:[%s4 + $0x50] sm:$0xff]
    %v981 = vld [vmem:[%s4 + $0x58] sm:$0xff]
    %v982 = vld [vmem:[%s4 + $0x60] sm:$0xff]
    %v983 = vld [vmem:[%s4 + $0x68] sm:$0xff]
    %v984 = vld [vmem:[%s4 + $0x70] sm:$0xff]
    %v985 = vld [vmem:[%s4 + $0x78] sm:$0xff]
    %v986 = vld [vmem:[%s4 + $0x80] sm:$0xff]
    %v987 = vld [vmem:[%s4 + $0x88] sm:$0xff]
    %v988 = vld [vmem:[%s4 + $0x90] sm:$0xff]
    %v989 = vld [vmem:[%s4 + $0x98] sm:$0xff]
    %v990 = vld [vmem:[%s4 + $0xa0] sm:$0xff]
    %v991 = vld [vmem:[%s4 + $0xa8] sm:$0xff]
    %v992 = vld [vmem:[%s4 + $0xb0] sm:$0xff]
    %v993 = vld [vmem:[%s4 + $0xb8] sm:$0xff]
    %v994 = vld [vmem:[%s4 + $0xc0] sm:$0xff]
    %v995 = vld [vmem:[%s4 + $0xc8] sm:$0xff]
    %v996 = vld [vmem:[%s4 + $0xd0] sm:$0xff]
    %v997 = vld [vmem:[%s4 + $0xd8] sm:$0xff]
    %v998 = vld [vmem:[%s4 + $0xe0] sm:$0xff]
    %v999 = vld [vmem:[%s4 + $0xe8] sm:$0xff]
    %v1000 = vld [vmem:[%s4 + $0xf0] sm:$0xff]
    %v1001 = vld [vmem:[%s4 + $0xf8] sm:$0x3]
    %1003 = vset.pattern.permute.xlu0 0
    %1004 = vperm.xlu0 %1003, %v970
    %v1005 = vpop.permute.xlu0 %1004
    %1008 = vset.pattern.permute.xlu0 0
    %1009 = vperm.xlu0 %1008, %v971
    %v1010 = vpop.permute.xlu0 %1009
    %1013 = vset.pattern.permute.xlu0 0
    %1014 = vperm.xlu0 %1013, %v972
    %v1015 = vpop.permute.xlu0 %1014
    %1018 = vset.pattern.permute.xlu0 0
    %1019 = vperm.xlu0 %1018, %v973
    %v1020 = vpop.permute.xlu0 %1019
    %1023 = vset.pattern.permute.xlu0 0
    %1024 = vperm.xlu0 %1023, %v974
    %v1025 = vpop.permute.xlu0 %1024
    %1028 = vset.pattern.permute.xlu0 0
    %1029 = vperm.xlu0 %1028, %v975
    %v1030 = vpop.permute.xlu0 %1029
    %1033 = vset.pattern.permute.xlu0 0
    %1034 = vperm.xlu0 %1033, %v976
    %v1035 = vpop.permute.xlu0 %1034
    %1038 = vset.pattern.permute.xlu0 0
    %1039 = vperm.xlu0 %1038, %v977
    %v1040 = vpop.permute.xlu0 %1039
    %1043 = vset.pattern.permute.xlu0 0
    %1044 = vperm.xlu0 %1043, %v978
    %v1045 = vpop.permute.xlu0 %1044
    %1048 = vset.pattern.permute.xlu0 0
    %1049 = vperm.xlu0 %1048, %v979
    %v1050 = vpop.permute.xlu0 %1049
    %1053 = vset.pattern.permute.xlu0 0
    %1054 = vperm.xlu0 %1053, %v980
    %v1055 = vpop.permute.xlu0 %1054
    %1058 = vset.pattern.permute.xlu0 0
    %1059 = vperm.xlu0 %1058, %v981
    %v1060 = vpop.permute.xlu0 %1059
    %1063 = vset.pattern.permute.xlu0 0
    %1064 = vperm.xlu0 %1063, %v982
    %v1065 = vpop.permute.xlu0 %1064
    %1068 = vset.pattern.permute.xlu0 0
    %1069 = vperm.xlu0 %1068, %v983
    %v1070 = vpop.permute.xlu0 %1069
    %1073 = vset.pattern.permute.xlu0 0
    %1074 = vperm.xlu0 %1073, %v984
    %v1075 = vpop.permute.xlu0 %1074
    %1078 = vset.pattern.permute.xlu0 0
    %1079 = vperm.xlu0 %1078, %v985
    %v1080 = vpop.permute.xlu0 %1079
    %1083 = vset.pattern.permute.xlu0 0
    %1084 = vperm.xlu0 %1083, %v986
    %v1085 = vpop.permute.xlu0 %1084
    %1088 = vset.pattern.permute.xlu0 0
    %1089 = vperm.xlu0 %1088, %v987
    %v1090 = vpop.permute.xlu0 %1089
    %1093 = vset.pattern.permute.xlu0 0
    %1094 = vperm.xlu0 %1093, %v988
    %v1095 = vpop.permute.xlu0 %1094
    %1098 = vset.pattern.permute.xlu0 0
    %1099 = vperm.xlu0 %1098, %v989
    %v1100 = vpop.permute.xlu0 %1099
    %1103 = vset.pattern.permute.xlu0 0
    %1104 = vperm.xlu0 %1103, %v990
    %v1105 = vpop.permute.xlu0 %1104
    %1108 = vset.pattern.permute.xlu0 0
    %1109 = vperm.xlu0 %1108, %v991
    %v1110 = vpop.permute.xlu0 %1109
    %1113 = vset.pattern.permute.xlu0 0
    %1114 = vperm.xlu0 %1113, %v992
    %v1115 = vpop.permute.xlu0 %1114
    %1118 = vset.pattern.permute.xlu0 0
    %1119 = vperm.xlu0 %1118, %v993
    %v1120 = vpop.permute.xlu0 %1119
    %1123 = vset.pattern.permute.xlu0 0
    %1124 = vperm.xlu0 %1123, %v994
    %v1125 = vpop.permute.xlu0 %1124
    %1128 = vset.pattern.permute.xlu0 0
    %1129 = vperm.xlu0 %1128, %v995
    %v1130 = vpop.permute.xlu0 %1129
    %1133 = vset.pattern.permute.xlu0 0
    %1134 = vperm.xlu0 %1133, %v996
    %v1135 = vpop.permute.xlu0 %1134
    %1138 = vset.pattern.permute.xlu0 0
    %1139 = vperm.xlu0 %1138, %v997
    %v1140 = vpop.permute.xlu0 %1139
    %1143 = vset.pattern.permute.xlu0 0
    %1144 = vperm.xlu0 %1143, %v998
    %v1145 = vpop.permute.xlu0 %1144
    %1148 = vset.pattern.permute.xlu0 0
    %1149 = vperm.xlu0 %1148, %v999
    %v1150 = vpop.permute.xlu0 %1149
    %1153 = vset.pattern.permute.xlu0 0
    %1154 = vperm.xlu0 %1153, %v1000
    %v1155 = vpop.permute.xlu0 %1154
    %1158 = vset.pattern.permute.xlu0 0
    %1159 = vperm.xlu0 %1158, %v1001
    %v1160 = vpop.permute.xlu0 %1159
    %v1226 = vunpack.c.l.b16 %v858
    %v1227 = vunpack.c.h.b16 %v858
    %v1228 = vunpack.c.l.b16 %v859
    %v1229 = vunpack.c.l.b16 %v860
    %v1230 = vunpack.c.h.b16 %v860
    %v1231 = vunpack.c.l.b16 %v861
    %v1232 = vunpack.c.l.b16 %v862
    %v1233 = vunpack.c.h.b16 %v862
    %v1234 = vunpack.c.l.b16 %v863
    %v1235 = vunpack.c.l.b16 %v864
    %v1236 = vunpack.c.h.b16 %v864
    %v1237 = vunpack.c.l.b16 %v865
    %v1238 = vunpack.c.l.b16 %v866
    %v1239 = vunpack.c.h.b16 %v866
    %v1240 = vunpack.c.l.b16 %v867
    %v1241 = vunpack.c.l.b16 %v868
    %v1242 = vunpack.c.h.b16 %v868
    %v1243 = vunpack.c.l.b16 %v869
    %v1244 = vunpack.c.l.b16 %v870
    %v1245 = vunpack.c.h.b16 %v870
    %v1246 = vunpack.c.l.b16 %v871
    %v1247 = vunpack.c.l.b16 %v872
    %v1248 = vunpack.c.h.b16 %v872
    %v1249 = vunpack.c.l.b16 %v873
    %v1250 = vunpack.c.l.b16 %v874
    %v1251 = vunpack.c.h.b16 %v874
    %v1252 = vunpack.c.l.b16 %v875
    %v1253 = vunpack.c.l.b16 %v876
    %v1254 = vunpack.c.h.b16 %v876
    %v1255 = vunpack.c.l.b16 %v877
    %v1256 = vunpack.c.l.b16 %v878
    %v1257 = vunpack.c.h.b16 %v878
    %v1258 = vunpack.c.l.b16 %v879
    %v1259 = vunpack.c.l.b16 %v880
    %v1260 = vunpack.c.h.b16 %v880
    %v1261 = vunpack.c.l.b16 %v881
    %v1262 = vunpack.c.l.b16 %v882
    %v1263 = vunpack.c.h.b16 %v882
    %v1264 = vunpack.c.l.b16 %v883
    %v1265 = vunpack.c.l.b16 %v884
    %v1266 = vunpack.c.h.b16 %v884
    %v1267 = vunpack.c.l.b16 %v885
    %v1268 = vunpack.c.l.b16 %v886
    %v1269 = vunpack.c.h.b16 %v886
    %v1270 = vunpack.c.l.b16 %v887
    %v1271 = vunpack.c.l.b16 %v888
    %v1272 = vunpack.c.h.b16 %v888
    %v1273 = vunpack.c.l.b16 %v889
    %v1274 = vunpack.c.l.b16 %v890
    %v1275 = vunpack.c.h.b16 %v890
    %v1276 = vunpack.c.l.b16 %v891
    %v1277 = vunpack.c.l.b16 %v892
    %v1278 = vunpack.c.h.b16 %v892
    %v1279 = vunpack.c.l.b16 %v893
    %v1280 = vunpack.c.l.b16 %v894
    %v1281 = vunpack.c.h.b16 %v894
    %v1282 = vunpack.c.l.b16 %v895
    %v1283 = vunpack.c.l.b16 %v896
    %v1284 = vunpack.c.h.b16 %v896
    %v1285 = vunpack.c.l.b16 %v897
    %v1286 = vunpack.c.l.b16 %v898
    %v1287 = vunpack.c.h.b16 %v898
    %v1288 = vunpack.c.l.b16 %v899
    %v1289 = vunpack.c.l.b16 %v900
    %v1290 = vunpack.c.h.b16 %v900
    %v1291 = vunpack.c.l.b16 %v901
    %v1292 = vunpack.c.l.b16 %v902
    %v1293 = vunpack.c.h.b16 %v902
    %v1294 = vunpack.c.l.b16 %v903
    %v1295 = vunpack.c.l.b16 %v904
    %v1296 = vunpack.c.h.b16 %v904
    %v1297 = vunpack.c.l.b16 %v905
    %v1298 = vunpack.c.l.b16 %v906
    %v1299 = vunpack.c.h.b16 %v906
    %v1300 = vunpack.c.l.b16 %v907
    %v1301 = vunpack.c.l.b16 %v908
    %v1302 = vunpack.c.h.b16 %v908
    %v1303 = vunpack.c.l.b16 %v909
    %v1304 = vunpack.c.l.b16 %v910
    %v1305 = vunpack.c.h.b16 %v910
    %v1306 = vunpack.c.l.b16 %v911
    %v1307 = vunpack.c.l.b16 %v912
    %v1308 = vunpack.c.h.b16 %v912
    %v1309 = vunpack.c.l.b16 %v913
    %v1310 = vunpack.c.l.b16 %v914
    %v1311 = vunpack.c.h.b16 %v914
    %v1312 = vunpack.c.l.b16 %v915
    %v1313 = vunpack.c.l.b16 %v916
    %v1314 = vunpack.c.h.b16 %v916
    %v1315 = vunpack.c.l.b16 %v917
    %v1316 = vunpack.c.l.b16 %v918
    %v1317 = vunpack.c.h.b16 %v918
    %v1318 = vunpack.c.l.b16 %v919
    %v1319 = vunpack.c.l.b16 %v920
    %v1320 = vunpack.c.h.b16 %v920
    %v1321 = vunpack.c.l.b16 %v921
    %v1322 = vpack.c.b16 %v1229, %v1226
    %v1323 = vpack.c.b16 %v1230, %v1227
    %v1324 = vpack.c.b16 %v1231, %v1228
    %v1325 = vpack.c.b16 %v1235, %v1232
    %v1326 = vpack.c.b16 %v1236, %v1233
    %v1327 = vpack.c.b16 %v1237, %v1234
    %v1328 = vpack.c.b16 %v1241, %v1238
    %v1329 = vpack.c.b16 %v1242, %v1239
    %v1330 = vpack.c.b16 %v1243, %v1240
    %v1331 = vpack.c.b16 %v1247, %v1244
    %v1332 = vpack.c.b16 %v1248, %v1245
    %v1333 = vpack.c.b16 %v1249, %v1246
    %v1334 = vpack.c.b16 %v1253, %v1250
    %v1335 = vpack.c.b16 %v1254, %v1251
    %v1336 = vpack.c.b16 %v1255, %v1252
    %v1337 = vpack.c.b16 %v1259, %v1256
    %v1338 = vpack.c.b16 %v1260, %v1257
    %v1339 = vpack.c.b16 %v1261, %v1258
    %v1340 = vpack.c.b16 %v1265, %v1262
    %v1341 = vpack.c.b16 %v1266, %v1263
    %v1342 = vpack.c.b16 %v1267, %v1264
    %v1343 = vpack.c.b16 %v1271, %v1268
    %v1344 = vpack.c.b16 %v1272, %v1269
    %v1345 = vpack.c.b16 %v1273, %v1270
    %v1346 = vpack.c.b16 %v1277, %v1274
    %v1347 = vpack.c.b16 %v1278, %v1275
    %v1348 = vpack.c.b16 %v1279, %v1276
    %v1349 = vpack.c.b16 %v1283, %v1280
    %v1350 = vpack.c.b16 %v1284, %v1281
    %v1351 = vpack.c.b16 %v1285, %v1282
    %v1352 = vpack.c.b16 %v1289, %v1286
    %v1353 = vpack.c.b16 %v1290, %v1287
    %v1354 = vpack.c.b16 %v1291, %v1288
    %v1355 = vpack.c.b16 %v1295, %v1292
    %v1356 = vpack.c.b16 %v1296, %v1293
    %v1357 = vpack.c.b16 %v1297, %v1294
    %v1358 = vpack.c.b16 %v1301, %v1298
    %v1359 = vpack.c.b16 %v1302, %v1299
    %v1360 = vpack.c.b16 %v1303, %v1300
    %v1361 = vpack.c.b16 %v1307, %v1304
    %v1362 = vpack.c.b16 %v1308, %v1305
    %v1363 = vpack.c.b16 %v1309, %v1306
    %v1364 = vpack.c.b16 %v1313, %v1310
    %v1365 = vpack.c.b16 %v1314, %v1311
    %v1366 = vpack.c.b16 %v1315, %v1312
    %v1367 = vpack.c.b16 %v1319, %v1316
    %v1368 = vpack.c.b16 %v1320, %v1317
    %v1369 = vpack.c.b16 %v1321, %v1318
    %1418 = vmatprep.subr.bf16.mxu0 %v923
    %1419 = vmatpush1.bf16.msra.mxu0 %v922
    %1420 = vmatprep.subr.bf16.mxu0 %v925
    %1421 = vmatpush1.bf16.msra.mxu0 %v924
    %1422 = vmatprep.subr.bf16.mxu0 %v927
    %1423 = vmatpush1.bf16.msra.mxu0 %v926
    %1424 = vmatprep.subr.bf16.mxu0 %v929
    %1425 = vmatpush1.bf16.msra.mxu0 %v928
    %1426 = vmatprep.subr.bf16.mxu0 %v931
    %1427 = vmatpush1.bf16.msra.mxu0 %v930
    %1428 = vmatprep.subr.bf16.mxu0 %v933
    %1429 = vmatpush1.bf16.msra.mxu0 %v932
    %1430 = vmatprep.subr.bf16.mxu0 %v935
    %1431 = vmatpush1.bf16.msra.mxu0 %v934
    %1432 = vmatprep.subr.bf16.mxu0 %v937
    %1433 = vmatpush1.bf16.msra.mxu0 %v936
    %1434 = vmatprep.subr.bf16.mxu0 %v939
    %1435 = vmatpush1.bf16.msra.mxu0 %v938
    %1436 = vmatprep.subr.bf16.mxu0 %v941
    %1437 = vmatpush1.bf16.msra.mxu0 %v940
    %1438 = vmatprep.subr.bf16.mxu0 %v943
    %1439 = vmatpush1.bf16.msra.mxu0 %v942
    %1440 = vmatprep.subr.bf16.mxu0 %v945
    %1441 = vmatpush1.bf16.msra.mxu0 %v944
    %1442 = vmatprep.subr.bf16.mxu0 %v947
    %1443 = vmatpush1.bf16.msra.mxu0 %v946
    %1444 = vmatprep.subr.bf16.mxu0 %v949
    %1445 = vmatpush1.bf16.msra.mxu0 %v948
    %1446 = vmatprep.subr.bf16.mxu0 %v951
    %1447 = vmatpush1.bf16.msra.mxu0 %v950
    %1448 = vmatprep.subr.bf16.mxu0 %v953
    %1449 = vmatpush1.bf16.msra.mxu0 %v952
    %1450 = vmatprep.mubr.bf16.mxu0 %v1323
    %1451 = vmatmul.mubr.bf16.gmra.mrb[0].mxu0 %v1322
    %v1452 = vpop.f32.mrb[0].mxu0
    %v1453 = vadd.f32 %v1005, %v1452
    %v1454 = vpop.f32.mrb[0].mxu0
    %v1455 = vadd.f32 %v1005, %v1454
    %v1456 = vpop.f32.mrb[0].mxu0
    %v1457 = vadd.f32 %v1010, %v1456
    %v1458 = vpop.f32.mrb[0].mxu0
    %v1459 = vadd.f32 %v1010, %v1458
    %1460 = vmatprep.mubr.bf16.mxu0 %v1326
    %1461 = vmatmul.mubr.bf16.gmra.mrb[0].mxu0 %v1325
    %v1462 = vpop.f32.mrb[0].mxu0
    %v1463 = vadd.f32 %v1015, %v1462
    %v1464 = vpop.f32.mrb[0].mxu0
    %v1465 = vadd.f32 %v1015, %v1464
    %v1466 = vpop.f32.mrb[0].mxu0
    %v1467 = vadd.f32 %v1020, %v1466
    %v1468 = vpop.f32.mrb[0].mxu0
    %v1469 = vadd.f32 %v1020, %v1468
    %1470 = vmatprep.mubr.bf16.mxu0 %v1329
    %1471 = vmatmul.mubr.bf16.gmra.mrb[0].mxu0 %v1328
    %v1472 = vpop.f32.mrb[0].mxu0
    %v1473 = vadd.f32 %v1025, %v1472
    %v1474 = vpop.f32.mrb[0].mxu0
    %v1475 = vadd.f32 %v1025, %v1474
    %v1476 = vpop.f32.mrb[0].mxu0
    %v1477 = vadd.f32 %v1030, %v1476
    %v1478 = vpop.f32.mrb[0].mxu0
    %v1479 = vadd.f32 %v1030, %v1478
    %1480 = vmatprep.mubr.bf16.mxu0 %v1332
    %1481 = vmatmul.mubr.bf16.gmra.mrb[0].mxu0 %v1331
    %v1482 = vpop.f32.mrb[0].mxu0
    %v1483 = vadd.f32 %v1035, %v1482
    %v1484 = vpop.f32.mrb[0].mxu0
    %v1485 = vadd.f32 %v1035, %v1484
    %v1486 = vpop.f32.mrb[0].mxu0
    %v1487 = vadd.f32 %v1040, %v1486
    %v1488 = vpop.f32.mrb[0].mxu0
    %v1489 = vadd.f32 %v1040, %v1488
    %1490 = vmatprep.mubr.bf16.mxu0 %v1335
    %1491 = vmatmul.mubr.bf16.gmra.mrb[0].mxu0 %v1334
    %v1492 = vpop.f32.mrb[0].mxu0
    %v1493 = vadd.f32 %v1045, %v1492
    %v1494 = vpop.f32.mrb[0].mxu0
    %v1495 = vadd.f32 %v1045, %v1494
    %v1496 = vpop.f32.mrb[0].mxu0
    %v1497 = vadd.f32 %v1050, %v1496
    %v1498 = vpop.f32.mrb[0].mxu0
    %v1499 = vadd.f32 %v1050, %v1498
    %1500 = vmatprep.mubr.bf16.mxu0 %v1338
    %1501 = vmatmul.mubr.bf16.gmra.mrb[0].mxu0 %v1337
    %v1502 = vpop.f32.mrb[0].mxu0
    %v1503 = vadd.f32 %v1055, %v1502
    %v1504 = vpop.f32.mrb[0].mxu0
    %v1505 = vadd.f32 %v1055, %v1504
    %v1506 = vpop.f32.mrb[0].mxu0
    %v1507 = vadd.f32 %v1060, %v1506
    %v1508 = vpop.f32.mrb[0].mxu0
    %v1509 = vadd.f32 %v1060, %v1508
    %1510 = vmatprep.mubr.bf16.mxu0 %v1341
    %1511 = vmatmul.mubr.bf16.gmra.mrb[0].mxu0 %v1340
    %v1512 = vpop.f32.mrb[0].mxu0
    %v1513 = vadd.f32 %v1065, %v1512
    %v1514 = vpop.f32.mrb[0].mxu0
    %v1515 = vadd.f32 %v1065, %v1514
    %v1516 = vpop.f32.mrb[0].mxu0
    %v1517 = vadd.f32 %v1070, %v1516
    %v1518 = vpop.f32.mrb[0].mxu0
    %v1519 = vadd.f32 %v1070, %v1518
    %1520 = vmatprep.mubr.bf16.mxu0 %v1344
    %1521 = vmatmul.mubr.bf16.gmra.mrb[0].mxu0 %v1343
    %v1522 = vpop.f32.mrb[0].mxu0
    %v1523 = vadd.f32 %v1075, %v1522
    %v1524 = vpop.f32.mrb[0].mxu0
    %v1525 = vadd.f32 %v1075, %v1524
    %v1526 = vpop.f32.mrb[0].mxu0
    %v1527 = vadd.f32 %v1080, %v1526
    %v1528 = vpop.f32.mrb[0].mxu0
    %v1529 = vadd.f32 %v1080, %v1528
    %1530 = vmatprep.mubr.bf16.mxu0 %v1347
    %1531 = vmatmul.mubr.bf16.gmra.mrb[0].mxu0 %v1346
    %v1532 = vpop.f32.mrb[0].mxu0
    %v1533 = vadd.f32 %v1085, %v1532
    %v1534 = vpop.f32.mrb[0].mxu0
    %v1535 = vadd.f32 %v1085, %v1534
    %v1536 = vpop.f32.mrb[0].mxu0
    %v1537 = vadd.f32 %v1090, %v1536
    %v1538 = vpop.f32.mrb[0].mxu0
    %v1539 = vadd.f32 %v1090, %v1538
    %1540 = vmatprep.mubr.bf16.mxu0 %v1350
    %1541 = vmatmul.mubr.bf16.gmra.mrb[0].mxu0 %v1349
    %v1542 = vpop.f32.mrb[0].mxu0
    %v1543 = vadd.f32 %v1095, %v1542
    %v1544 = vpop.f32.mrb[0].mxu0
    %v1545 = vadd.f32 %v1095, %v1544
    %v1546 = vpop.f32.mrb[0].mxu0
    %v1547 = vadd.f32 %v1100, %v1546
    %v1548 = vpop.f32.mrb[0].mxu0
    %v1549 = vadd.f32 %v1100, %v1548
    %1550 = vmatprep.mubr.bf16.mxu0 %v1353
    %1551 = vmatmul.mubr.bf16.gmra.mrb[0].mxu0 %v1352
    %v1552 = vpop.f32.mrb[0].mxu0
    %v1553 = vadd.f32 %v1105, %v1552
    %v1554 = vpop.f32.mrb[0].mxu0
    %v1555 = vadd.f32 %v1105, %v1554
    %v1556 = vpop.f32.mrb[0].mxu0
    %v1557 = vadd.f32 %v1110, %v1556
    %v1558 = vpop.f32.mrb[0].mxu0
    %v1559 = vadd.f32 %v1110, %v1558
    %1560 = vmatprep.mubr.bf16.mxu0 %v1356
    %1561 = vmatmul.mubr.bf16.gmra.mrb[0].mxu0 %v1355
    %v1562 = vpop.f32.mrb[0].mxu0
    %v1563 = vadd.f32 %v1115, %v1562
    %v1564 = vpop.f32.mrb[0].mxu0
    %v1565 = vadd.f32 %v1115, %v1564
    %v1566 = vpop.f32.mrb[0].mxu0
    %v1567 = vadd.f32 %v1120, %v1566
    %v1568 = vpop.f32.mrb[0].mxu0
    %v1569 = vadd.f32 %v1120, %v1568
    %1570 = vmatprep.mubr.bf16.mxu0 %v1359
    %1571 = vmatmul.mubr.bf16.gmra.mrb[0].mxu0 %v1358
    %v1572 = vpop.f32.mrb[0].mxu0
    %v1573 = vadd.f32 %v1125, %v1572
    %v1574 = vpop.f32.mrb[0].mxu0
    %v1575 = vadd.f32 %v1125, %v1574
    %v1576 = vpop.f32.mrb[0].mxu0
    %v1577 = vadd.f32 %v1130, %v1576
    %v1578 = vpop.f32.mrb[0].mxu0
    %v1579 = vadd.f32 %v1130, %v1578
    %1580 = vmatprep.mubr.bf16.mxu0 %v1362
    %1581 = vmatmul.mubr.bf16.gmra.mrb[0].mxu0 %v1361
    %v1582 = vpop.f32.mrb[0].mxu0
    %v1583 = vadd.f32 %v1135, %v1582
    %v1584 = vpop.f32.mrb[0].mxu0
    %v1585 = vadd.f32 %v1135, %v1584
    %v1586 = vpop.f32.mrb[0].mxu0
    %v1587 = vadd.f32 %v1140, %v1586
    %v1588 = vpop.f32.mrb[0].mxu0
    %v1589 = vadd.f32 %v1140, %v1588
    %1590 = vmatprep.mubr.bf16.mxu0 %v1365
    %1591 = vmatmul.mubr.bf16.gmra.mrb[0].mxu0 %v1364
    %v1592 = vpop.f32.mrb[0].mxu0
    %v1593 = vadd.f32 %v1145, %v1592
    %v1594 = vpop.f32.mrb[0].mxu0
    %v1595 = vadd.f32 %v1145, %v1594
    %v1596 = vpop.f32.mrb[0].mxu0
    %v1597 = vadd.f32 %v1150, %v1596
    %v1598 = vpop.f32.mrb[0].mxu0
    %v1599 = vadd.f32 %v1150, %v1598
    %1600 = vmatprep.mubr.bf16.mxu0 %v1368
    %1601 = vmatmul.mubr.bf16.gmra.mrb[0].mxu0 %v1367
    %v1602 = vpop.f32.mrb[0].mxu0
    %v1603 = vadd.f32 %v1155, %v1602
    %v1604 = vpop.f32.mrb[0].mxu0
    %v1605 = vadd.f32 %v1155, %v1604
    %v1606 = vpop.f32.mrb[0].mxu0
    %v1607 = vadd.f32 %v1160, %v1606
    %v1608 = vpop.f32.mrb[0].mxu0
    %v1609 = vadd.f32 %v1160, %v1608
    %1610 = vdwg.mxu0
    %1611 = vmatprep.subr.bf16.mxu0 %v955
    %1612 = vmatpush1.bf16.msra.mxu0 %v954
    %1613 = vmatprep.subr.bf16.mxu0 %v957
    %1614 = vmatpush1.bf16.msra.mxu0 %v956
    %1615 = vmatprep.subr.bf16.mxu0 %v959
    %1616 = vmatpush1.bf16.msra.mxu0 %v958
    %1617 = vmatprep.subr.bf16.mxu0 %v961
    %1618 = vmatpush1.bf16.msra.mxu0 %v960
    %1619 = vmatprep.subr.bf16.mxu0 %v963
    %1620 = vmatpush1.bf16.msra.mxu0 %v962
    %1621 = vmatprep.subr.bf16.mxu0 %v965
    %1622 = vmatpush1.bf16.msra.mxu0 %v964
    %1623 = vmatprep.subr.bf16.mxu0 %v967
    %1624 = vmatpush1.bf16.msra.mxu0 %v966
    %1625 = vmatprep.subr.bf16.mxu0 %v969
    %1626 = vmatpush1.bf16.msra.mxu0 %v968
    %1627 = vmatprep.subr.bf16.mxu0 0
    %1628 = vmatpush1.bf16.msra.mxu0 0
    %1629 = vmatprep.subr.bf16.mxu0 0
    %1630 = vmatpush1.bf16.msra.mxu0 0
    %1631 = vmatprep.subr.bf16.mxu0 0
    %1632 = vmatpush1.bf16.msra.mxu0 0
    %1633 = vmatprep.subr.bf16.mxu0 0
    %1634 = vmatpush1.bf16.msra.mxu0 0
    %1635 = vmatprep.subr.bf16.mxu0 0
    %1636 = vmatpush1.bf16.msra.mxu0 0
    %1637 = vmatprep.subr.bf16.mxu0 0
    %1638 = vmatpush1.bf16.msra.mxu0 0
    %1639 = vmatprep.subr.bf16.mxu0 0
    %1640 = vmatpush1.bf16.msra.mxu0 0
    %1641 = vmatprep.subr.bf16.mxu0 0
    %1642 = vmatpush1.bf16.msra.mxu0 0
    %1643 = vmatprep.mubr.bf16.mxu0 0
    %1644 = vmatmul.mubr.bf16.gmra.mrb[0].mxu0 %v1324
    %v1645 = vpop.f32.mrb[0].mxu0
    %v1646 = vadd.f32 %v1453, %v1645
    %v1647 = vpop.f32.mrb[0].mxu0
    %v1648 = vadd.f32 %v1455, %v1647
    %v1649 = vpop.f32.mrb[0].mxu0
    %v1650 = vadd.f32 %v1457, %v1649
    %v1651 = vpop.f32.mrb[0].mxu0
    %v1652 = vadd.f32 %v1459, %v1651
    %1653 = vmatprep.mubr.bf16.mxu0 0
    %1654 = vmatmul.mubr.bf16.gmra.mrb[0].mxu0 %v1327
    %v1655 = vpop.f32.mrb[0].mxu0
    %v1656 = vadd.f32 %v1463, %v1655
    %v1657 = vpop.f32.mrb[0].mxu0
    %v1658 = vadd.f32 %v1465, %v1657
    %v1659 = vpop.f32.mrb[0].mxu0
    %v1660 = vadd.f32 %v1467, %v1659
    %v1661 = vpop.f32.mrb[0].mxu0
    %v1662 = vadd.f32 %v1469, %v1661
    %1663 = vmatprep.mubr.bf16.mxu0 0
    %1664 = vmatmul.mubr.bf16.gmra.mrb[0].mxu0 %v1330
    %v1665 = vpop.f32.mrb[0].mxu0
    %v1666 = vadd.f32 %v1473, %v1665
    %v1667 = vpop.f32.mrb[0].mxu0
    %v1668 = vadd.f32 %v1475, %v1667
    %v1669 = vpop.f32.mrb[0].mxu0
    %v1670 = vadd.f32 %v1477, %v1669
    %v1671 = vpop.f32.mrb[0].mxu0
    %v1672 = vadd.f32 %v1479, %v1671
    %1673 = vmatprep.mubr.bf16.mxu0 0
    %1674 = vmatmul.mubr.bf16.gmra.mrb[0].mxu0 %v1333
    %v1675 = vpop.f32.mrb[0].mxu0
    %v1676 = vadd.f32 %v1483, %v1675
    %v1677 = vpop.f32.mrb[0].mxu0
    %v1678 = vadd.f32 %v1485, %v1677
    %v1679 = vpop.f32.mrb[0].mxu0
    %v1680 = vadd.f32 %v1487, %v1679
    %v1681 = vpop.f32.mrb[0].mxu0
    %v1682 = vadd.f32 %v1489, %v1681
    %1683 = vmatprep.mubr.bf16.mxu0 0
    %1684 = vmatmul.mubr.bf16.gmra.mrb[0].mxu0 %v1336
    %v1685 = vpop.f32.mrb[0].mxu0
    %v1686 = vadd.f32 %v1493, %v1685
    %v1687 = vpop.f32.mrb[0].mxu0
    %v1688 = vadd.f32 %v1495, %v1687
    %v1689 = vpop.f32.mrb[0].mxu0
    %v1690 = vadd.f32 %v1497, %v1689
    %v1691 = vpop.f32.mrb[0].mxu0
    %v1692 = vadd.f32 %v1499, %v1691
    %1693 = vmatprep.mubr.bf16.mxu0 0
    %1694 = vmatmul.mubr.bf16.gmra.mrb[0].mxu0 %v1339
    %v1695 = vpop.f32.mrb[0].mxu0
    %v1696 = vadd.f32 %v1503, %v1695
    %v1697 = vpop.f32.mrb[0].mxu0
    %v1698 = vadd.f32 %v1505, %v1697
    %v1699 = vpop.f32.mrb[0].mxu0
    %v1700 = vadd.f32 %v1507, %v1699
    %v1701 = vpop.f32.mrb[0].mxu0
    %v1702 = vadd.f32 %v1509, %v1701
    %1703 = vmatprep.mubr.bf16.mxu0 0
    %1704 = vmatmul.mubr.bf16.gmra.mrb[0].mxu0 %v1342
    %v1705 = vpop.f32.mrb[0].mxu0
    %v1706 = vadd.f32 %v1513, %v1705
    %v1707 = vpop.f32.mrb[0].mxu0
    %v1708 = vadd.f32 %v1515, %v1707
    %v1709 = vpop.f32.mrb[0].mxu0
    %v1710 = vadd.f32 %v1517, %v1709
    %v1711 = vpop.f32.mrb[0].mxu0
    %v1712 = vadd.f32 %v1519, %v1711
    %1713 = vmatprep.mubr.bf16.mxu0 0
    %1714 = vmatmul.mubr.bf16.gmra.mrb[0].mxu0 %v1345
    %v1715 = vpop.f32.mrb[0].mxu0
    %v1716 = vadd.f32 %v1523, %v1715
    %v1717 = vpop.f32.mrb[0].mxu0
    %v1718 = vadd.f32 %v1525, %v1717
    %v1719 = vpop.f32.mrb[0].mxu0
    %v1720 = vadd.f32 %v1527, %v1719
    %v1721 = vpop.f32.mrb[0].mxu0
    %v1722 = vadd.f32 %v1529, %v1721
    %1723 = vmatprep.mubr.bf16.mxu0 0
    %1724 = vmatmul.mubr.bf16.gmra.mrb[0].mxu0 %v1348
    %v1725 = vpop.f32.mrb[0].mxu0
    %v1726 = vadd.f32 %v1533, %v1725
    %v1727 = vpop.f32.mrb[0].mxu0
    %v1728 = vadd.f32 %v1535, %v1727
    %v1729 = vpop.f32.mrb[0].mxu0
    %v1730 = vadd.f32 %v1537, %v1729
    %v1731 = vpop.f32.mrb[0].mxu0
    %v1732 = vadd.f32 %v1539, %v1731
    %1733 = vmatprep.mubr.bf16.mxu0 0
    %1734 = vmatmul.mubr.bf16.gmra.mrb[0].mxu0 %v1351
    %v1735 = vpop.f32.mrb[0].mxu0
    %v1736 = vadd.f32 %v1543, %v1735
    %v1737 = vpop.f32.mrb[0].mxu0
    %v1738 = vadd.f32 %v1545, %v1737
    %v1739 = vpop.f32.mrb[0].mxu0
    %v1740 = vadd.f32 %v1547, %v1739
    %v1741 = vpop.f32.mrb[0].mxu0
    %v1742 = vadd.f32 %v1549, %v1741
    %1743 = vmatprep.mubr.bf16.mxu0 0
    %1744 = vmatmul.mubr.bf16.gmra.mrb[0].mxu0 %v1354
    %v1745 = vpop.f32.mrb[0].mxu0
    %v1746 = vadd.f32 %v1553, %v1745
    %v1747 = vpop.f32.mrb[0].mxu0
    %v1748 = vadd.f32 %v1555, %v1747
    %v1749 = vpop.f32.mrb[0].mxu0
    %v1750 = vadd.f32 %v1557, %v1749
    %v1751 = vpop.f32.mrb[0].mxu0
    %v1752 = vadd.f32 %v1559, %v1751
    %1753 = vmatprep.mubr.bf16.mxu0 0
    %1754 = vmatmul.mubr.bf16.gmra.mrb[0].mxu0 %v1357
    %v1755 = vpop.f32.mrb[0].mxu0
    %v1756 = vadd.f32 %v1563, %v1755
    %v1757 = vpop.f32.mrb[0].mxu0
    %v1758 = vadd.f32 %v1565, %v1757
    %v1759 = vpop.f32.mrb[0].mxu0
    %v1760 = vadd.f32 %v1567, %v1759
    %v1761 = vpop.f32.mrb[0].mxu0
    %v1762 = vadd.f32 %v1569, %v1761
    %1763 = vmatprep.mubr.bf16.mxu0 0
    %1764 = vmatmul.mubr.bf16.gmra.mrb[0].mxu0 %v1360
    %v1765 = vpop.f32.mrb[0].mxu0
    %v1766 = vadd.f32 %v1573, %v1765
    %v1767 = vpop.f32.mrb[0].mxu0
    %v1768 = vadd.f32 %v1575, %v1767
    %v1769 = vpop.f32.mrb[0].mxu0
    %v1770 = vadd.f32 %v1577, %v1769
    %v1771 = vpop.f32.mrb[0].mxu0
    %v1772 = vadd.f32 %v1579, %v1771
    %1773 = vmatprep.mubr.bf16.mxu0 0
    %1774 = vmatmul.mubr.bf16.gmra.mrb[0].mxu0 %v1363
    %v1775 = vpop.f32.mrb[0].mxu0
    %v1776 = vadd.f32 %v1583, %v1775
    %v1777 = vpop.f32.mrb[0].mxu0
    %v1778 = vadd.f32 %v1585, %v1777
    %v1779 = vpop.f32.mrb[0].mxu0
    %v1780 = vadd.f32 %v1587, %v1779
    %v1781 = vpop.f32.mrb[0].mxu0
    %v1782 = vadd.f32 %v1589, %v1781
    %1783 = vmatprep.mubr.bf16.mxu0 0
    %1784 = vmatmul.mubr.bf16.gmra.mrb[0].mxu0 %v1366
    %v1785 = vpop.f32.mrb[0].mxu0
    %v1786 = vadd.f32 %v1593, %v1785
    %v1787 = vpop.f32.mrb[0].mxu0
    %v1788 = vadd.f32 %v1595, %v1787
    %v1789 = vpop.f32.mrb[0].mxu0
    %v1790 = vadd.f32 %v1597, %v1789
    %v1791 = vpop.f32.mrb[0].mxu0
    %v1792 = vadd.f32 %v1599, %v1791
    %1793 = vmatprep.mubr.bf16.mxu0 0
    %1794 = vmatmul.mubr.bf16.gmra.mrb[0].mxu0 %v1369
    %v1795 = vpop.f32.mrb[0].mxu0
    %v1796 = vadd.f32 %v1603, %v1795
    %v1797 = vpop.f32.mrb[0].mxu0
    %v1798 = vadd.f32 %v1605, %v1797
    %v1799 = vpop.f32.mrb[0].mxu0
    %v1800 = vadd.f32 %v1607, %v1799
    %v1801 = vpop.f32.mrb[0].mxu0
    %v1802 = vadd.f32 %v1609, %v1801
    %1803 = vdwg.mxu0
    %v1804 = vmax.f32 %v1646, 0.0
    %v1805 = vmax.f32 %v1648, 0.0
    %v1806 = vmax.f32 %v1650, 0.0
    %v1807 = vmax.f32 %v1652, 0.0
    %v1808 = vmax.f32 %v1656, 0.0
    %v1809 = vmax.f32 %v1658, 0.0
    %v1810 = vmax.f32 %v1660, 0.0
    %v1811 = vmax.f32 %v1662, 0.0
    %v1812 = vmax.f32 %v1666, 0.0
    %v1813 = vmax.f32 %v1668, 0.0
    %v1814 = vmax.f32 %v1670, 0.0
    %v1815 = vmax.f32 %v1672, 0.0
    %v1816 = vmax.f32 %v1676, 0.0
    %v1817 = vmax.f32 %v1678, 0.0
    %v1818 = vmax.f32 %v1680, 0.0
    %v1819 = vmax.f32 %v1682, 0.0
    %v1820 = vmax.f32 %v1686, 0.0
    %v1821 = vmax.f32 %v1688, 0.0
    %v1822 = vmax.f32 %v1690, 0.0
    %v1823 = vmax.f32 %v1692, 0.0
    %v1824 = vmax.f32 %v1696, 0.0
    %v1825 = vmax.f32 %v1698, 0.0
    %v1826 = vmax.f32 %v1700, 0.0
    %v1827 = vmax.f32 %v1702, 0.0
    %v1828 = vmax.f32 %v1706, 0.0
    %v1829 = vmax.f32 %v1708, 0.0
    %v1830 = vmax.f32 %v1710, 0.0
    %v1831 = vmax.f32 %v1712, 0.0
    %v1832 = vmax.f32 %v1716, 0.0
    %v1833 = vmax.f32 %v1718, 0.0
    %v1834 = vmax.f32 %v1720, 0.0
    %v1835 = vmax.f32 %v1722, 0.0
    %v1836 = vmax.f32 %v1726, 0.0
    %v1837 = vmax.f32 %v1728, 0.0
    %v1838 = vmax.f32 %v1730, 0.0
    %v1839 = vmax.f32 %v1732, 0.0
    %v1840 = vmax.f32 %v1736, 0.0
    %v1841 = vmax.f32 %v1738, 0.0
    %v1842 = vmax.f32 %v1740, 0.0
    %v1843 = vmax.f32 %v1742, 0.0
    %v1844 = vmax.f32 %v1746, 0.0
    %v1845 = vmax.f32 %v1748, 0.0
    %v1846 = vmax.f32 %v1750, 0.0
    %v1847 = vmax.f32 %v1752, 0.0
    %v1848 = vmax.f32 %v1756, 0.0
    %v1849 = vmax.f32 %v1758, 0.0
    %v1850 = vmax.f32 %v1760, 0.0
    %v1851 = vmax.f32 %v1762, 0.0
    %v1852 = vmax.f32 %v1766, 0.0
    %v1853 = vmax.f32 %v1768, 0.0
    %v1854 = vmax.f32 %v1770, 0.0
    %v1855 = vmax.f32 %v1772, 0.0
    %v1856 = vmax.f32 %v1776, 0.0
    %v1857 = vmax.f32 %v1778, 0.0
    %v1858 = vmax.f32 %v1780, 0.0
    %v1859 = vmax.f32 %v1782, 0.0
    %v1860 = vmax.f32 %v1786, 0.0
    %v1861 = vmax.f32 %v1788, 0.0
    %v1862 = vmax.f32 %v1790, 0.0
    %v1863 = vmax.f32 %v1792, 0.0
    %v1864 = vmax.f32 %v1796, 0.0
    %v1865 = vmax.f32 %v1798, 0.0
    %v1866 = vmax.f32 %v1800, 0.0
    %v1867 = vmax.f32 %v1802, 0.0
    %v1868 = vld [vmem:[%s5] sm:$0xff]
    %v1869 = vld [vmem:[%s5 + $0x8] sm:$0xff]
    %v1870 = vld [vmem:[%s5 + $0x10] sm:$0xff]
    %v1871 = vld [vmem:[%s5 + $0x18] sm:$0xff]
    %v1872 = vld [vmem:[%s5 + $0x20] sm:$0xff]
    %v1873 = vld [vmem:[%s5 + $0x28] sm:$0x77]
    %v1874 = vpack.c.bf16 %v1806, %v1804
    %v1875 = vpack.c.bf16 %v1807, %v1805
    %v1876 = vpack.c.bf16 %v1810, %v1808
    %v1877 = vpack.c.bf16 %v1811, %v1809
    %v1878 = vpack.c.bf16 %v1814, %v1812
    %v1879 = vpack.c.bf16 %v1815, %v1813
    %v1880 = vpack.c.bf16 %v1818, %v1816
    %v1881 = vpack.c.bf16 %v1819, %v1817
    %v1882 = vpack.c.bf16 %v1822, %v1820
    %v1883 = vpack.c.bf16 %v1823, %v1821
    %v1884 = vpack.c.bf16 %v1826, %v1824
    %v1885 = vpack.c.bf16 %v1827, %v1825
    %v1886 = vpack.c.bf16 %v1830, %v1828
    %v1887 = vpack.c.bf16 %v1831, %v1829
    %v1888 = vpack.c.bf16 %v1834, %v1832
    %v1889 = vpack.c.bf16 %v1835, %v1833
    %v1890 = vpack.c.bf16 %v1838, %v1836
    %v1891 = vpack.c.bf16 %v1839, %v1837
    %v1892 = vpack.c.bf16 %v1842, %v1840
    %v1893 = vpack.c.bf16 %v1843, %v1841
    %v1894 = vpack.c.bf16 %v1846, %v1844
    %v1895 = vpack.c.bf16 %v1847, %v1845
    %v1896 = vpack.c.bf16 %v1850, %v1848
    %v1897 = vpack.c.bf16 %v1851, %v1849
    %v1898 = vpack.c.bf16 %v1854, %v1852
    %v1899 = vpack.c.bf16 %v1855, %v1853
    %v1900 = vpack.c.bf16 %v1858, %v1856
    %v1901 = vpack.c.bf16 %v1859, %v1857
    %v1902 = vpack.c.bf16 %v1862, %v1860
    %v1903 = vpack.c.bf16 %v1863, %v1861
    %v1904 = vpack.c.bf16 %v1866, %v1864
    %v1905 = vpack.c.bf16 %v1867, %v1865
    %v1906 = vld [vmem:[%s6] sm:$0xff]
    %v1907 = vld [vmem:[%s6 + $0x8] sm:$0xff]
    %v1908 = vld [vmem:[%s6 + $0x10] sm:$0xff]
    %v1909 = vld [vmem:[%s6 + $0x18] sm:$0xff]
    %v1910 = vld [vmem:[%s6 + $0x20] sm:$0xff]
    %v1911 = vld [vmem:[%s6 + $0x28] sm:$0x1f]
    %1913 = vset.pattern.permute.xlu0 0
    %1914 = vperm.xlu0 %1913, %v1906
    %v1915 = vpop.permute.xlu0 %1914
    %1918 = vset.pattern.permute.xlu0 0
    %1919 = vperm.xlu0 %1918, %v1907
    %v1920 = vpop.permute.xlu0 %1919
    %1923 = vset.pattern.permute.xlu0 0
    %1924 = vperm.xlu0 %1923, %v1908
    %v1925 = vpop.permute.xlu0 %1924
    %1928 = vset.pattern.permute.xlu0 0
    %1929 = vperm.xlu0 %1928, %v1909
    %v1930 = vpop.permute.xlu0 %1929
    %1933 = vset.pattern.permute.xlu0 0
    %1934 = vperm.xlu0 %1933, %v1910
    %v1935 = vpop.permute.xlu0 %1934
    %1938 = vset.pattern.permute.xlu0 0
    %1939 = vperm.xlu0 %1938, %v1911
    %v1940 = vpop.permute.xlu0 %1939
    %v1948 = vunpack.c.l.b16 %v1868
    %v1949 = vunpack.c.h.b16 %v1868
    %v1950 = vunpack.c.l.b16 %v1869
    %v1951 = vunpack.c.h.b16 %v1869
    %v1952 = vunpack.c.l.b16 %v1870
    %v1953 = vunpack.c.h.b16 %v1870
    %v1954 = vunpack.c.l.b16 %v1871
    %v1955 = vunpack.c.h.b16 %v1871
    %v1956 = vunpack.c.l.b16 %v1872
    %v1957 = vunpack.c.h.b16 %v1872
    %v1958 = vunpack.c.l.b16 %v1873
    %v1959 = vunpack.c.h.b16 %v1873
    %v1960 = vpack.c.b16 %v1950, %v1948
    %v1961 = vpack.c.b16 %v1951, %v1949
    %v1962 = vpack.c.b16 %v1954, %v1952
    %v1963 = vpack.c.b16 %v1955, %v1953
    %v1964 = vpack.c.b16 %v1958, %v1956
    %v1965 = vpack.c.b16 %v1959, %v1957
    %vm1969 = vcmask 998400
    %v1971 = vsel %vm1969, %v1961, 0
    %v1974 = vsel %vm1969, %v1963, 0
    %v1977 = vsel %vm1969, %v1965, 0
    %vm1979 = vcmask 1044480
    %v1981 = vsel %vm1979, %v1904, 0
    %v1984 = vsel %vm1979, %v1905, 0
    %1986 = vmatprep.subr.bf16.mxu0 %v1875
    %1987 = vmatpush1.bf16.msra.mxu0 %v1874
    %1988 = vmatprep.subr.bf16.mxu0 %v1877
    %1989 = vmatpush1.bf16.msra.mxu0 %v1876
    %1990 = vmatprep.subr.bf16.mxu0 %v1879
    %1991 = vmatpush1.bf16.msra.mxu0 %v1878
    %1992 = vmatprep.subr.bf16.mxu0 %v1881
    %1993 = vmatpush1.bf16.msra.mxu0 %v1880
    %1994 = vmatprep.subr.bf16.mxu0 %v1883
    %1995 = vmatpush1.bf16.msra.mxu0 %v1882
    %1996 = vmatprep.subr.bf16.mxu0 %v1885
    %1997 = vmatpush1.bf16.msra.mxu0 %v1884
    %1998 = vmatprep.subr.bf16.mxu0 %v1887
    %1999 = vmatpush1.bf16.msra.mxu0 %v1886
    %2000 = vmatprep.subr.bf16.mxu0 %v1889
    %2001 = vmatpush1.bf16.msra.mxu0 %v1888
    %2002 = vmatprep.subr.bf16.mxu0 %v1891
    %2003 = vmatpush1.bf16.msra.mxu0 %v1890
    %2004 = vmatprep.subr.bf16.mxu0 %v1893
    %2005 = vmatpush1.bf16.msra.mxu0 %v1892
    %2006 = vmatprep.subr.bf16.mxu0 %v1895
    %2007 = vmatpush1.bf16.msra.mxu0 %v1894
    %2008 = vmatprep.subr.bf16.mxu0 %v1897
    %2009 = vmatpush1.bf16.msra.mxu0 %v1896
    %2010 = vmatprep.subr.bf16.mxu0 %v1899
    %2011 = vmatpush1.bf16.msra.mxu0 %v1898
    %2012 = vmatprep.subr.bf16.mxu0 %v1901
    %2013 = vmatpush1.bf16.msra.mxu0 %v1900
    %2014 = vmatprep.subr.bf16.mxu0 %v1903
    %2015 = vmatpush1.bf16.msra.mxu0 %v1902
    %2016 = vmatprep.subr.bf16.mxu0 %v1984
    %2017 = vmatpush1.bf16.msra.mxu0 %v1981
    %2018 = vmatprep.mubr.bf16.mxu0 %v1971
    %2019 = vmatmul.mubr.bf16.gmra.mrb[0].mxu0 %v1960
    %v2020 = vpop.f32.mrb[0].mxu0
    %v2021 = vadd.f32 %v1915, %v2020
    %v2022 = vpop.f32.mrb[0].mxu0
    %v2023 = vadd.f32 %v1915, %v2022
    %v2024 = vpop.f32.mrb[0].mxu0
    %v2025 = vadd.f32 %v1920, %v2024
    %v2026 = vpop.f32.mrb[0].mxu0
    %v2027 = vadd.f32 %v1920, %v2026
    %2028 = vmatprep.mubr.bf16.mxu0 %v1974
    %2029 = vmatmul.mubr.bf16.gmra.mrb[0].mxu0 %v1962
    %v2030 = vpop.f32.mrb[0].mxu0
    %v2031 = vadd.f32 %v1925, %v2030
    %v2032 = vpop.f32.mrb[0].mxu0
    %v2033 = vadd.f32 %v1925, %v2032
    %v2034 = vpop.f32.mrb[0].mxu0
    %v2035 = vadd.f32 %v1930, %v2034
    %v2036 = vpop.f32.mrb[0].mxu0
    %v2037 = vadd.f32 %v1930, %v2036
    %2038 = vmatprep.mubr.bf16.mxu0 %v1977
    %2039 = vmatmul.mubr.bf16.gmra.mrb[0].mxu0 %v1964
    %v2040 = vpop.f32.mrb[0].mxu0
    %v2041 = vadd.f32 %v1935, %v2040
    %v2042 = vpop.f32.mrb[0].mxu0
    %v2043 = vadd.f32 %v1935, %v2042
    %v2044 = vpop.f32.mrb[0].mxu0
    %v2045 = vadd.f32 %v1940, %v2044
    %v2046 = vpop.f32.mrb[0].mxu0
    %v2047 = vadd.f32 %v1940, %v2046
    %2048 = vdwg.mxu0
    %v2049 = vmax.f32 %v2021, 0.0
    %v2050 = vmax.f32 %v2023, 0.0
    %v2051 = vmax.f32 %v2025, 0.0
    %v2052 = vmax.f32 %v2027, 0.0
    %v2053 = vmax.f32 %v2031, 0.0
    %v2054 = vmax.f32 %v2033, 0.0
    %v2055 = vmax.f32 %v2035, 0.0
    %v2056 = vmax.f32 %v2037, 0.0
    %v2057 = vmax.f32 %v2041, 0.0
    %v2058 = vmax.f32 %v2043, 0.0
    %v2059 = vmax.f32 %v2045, 0.0
    %v2060 = vmax.f32 %v2047, 0.0
    %v2061 = vld [vmem:[%s7] sm:$0xf]
    %v2062 = vld [vmem:[%s7 + $0x4] sm:$0x1]
    %v2063 = vpack.c.bf16 %v2051, %v2049
    %v2064 = vpack.c.bf16 %v2052, %v2050
    %v2065 = vpack.c.bf16 %v2055, %v2053
    %v2066 = vpack.c.bf16 %v2056, %v2054
    %v2067 = vpack.c.bf16 %v2059, %v2057
    %v2068 = vpack.c.bf16 %v2060, %v2058
    %v2069 = vld [vmem:[%s8] sm:$0xff]
    %v2070 = vld [vmem:[%s8 + $0x8] sm:$0x1]
    %2072 = vset.pattern.permute.xlu0 0
    %2073 = vperm.xlu0 %2072, %v2069
    %v2074 = vpop.permute.xlu0 %2073
    %2077 = vset.pattern.permute.xlu0 0
    %2078 = vperm.xlu0 %2077, %v2070
    %v2079 = vpop.permute.xlu0 %2078
    %v2083 = vunpack.c.l.b16 %v2061
    %v2084 = vunpack.c.l.b16 %v2062
    %v2085 = vpack.c.b16 %v2084, %v2083
    %vm2086 = vcmask 367616
    %v2088 = vsel %vm2086, %v2085, 0
    %vm2090 = vcmask 1045504
    %vm2091 = vcmask 1046528
    %v2092 = vsel %vm2090, 4294967295, 65535
    %v2093 = vsel %vm2091, %v2092, 0
    %v2095 = vand.u32 %v2067, %v2093
    %v2098 = vand.u32 %v2068, %v2093
    %2100 = vmatprep.subr.bf16.mxu0 %v2064
    %2101 = vmatpush1.bf16.msra.mxu0 %v2063
    %2102 = vmatprep.subr.bf16.mxu0 %v2066
    %2103 = vmatpush1.bf16.msra.mxu0 %v2065
    %2104 = vmatprep.subr.bf16.mxu0 %v2098
    %2105 = vmatpush1.bf16.msra.mxu0 %v2095
    %2106 = vmatprep.subr.bf16.mxu0 0
    %2107 = vmatpush1.bf16.msra.mxu0 0
    %2108 = vmatprep.subr.bf16.mxu0 0
    %2109 = vmatpush1.bf16.msra.mxu0 0
    %2110 = vmatprep.subr.bf16.mxu0 0
    %2111 = vmatpush1.bf16.msra.mxu0 0
    %2112 = vmatprep.subr.bf16.mxu0 0
    %2113 = vmatpush1.bf16.msra.mxu0 0
    %2114 = vmatprep.subr.bf16.mxu0 0
    %2115 = vmatpush1.bf16.msra.mxu0 0
    %2116 = vmatprep.subr.bf16.mxu0 0
    %2117 = vmatpush1.bf16.msra.mxu0 0
    %2118 = vmatprep.subr.bf16.mxu0 0
    %2119 = vmatpush1.bf16.msra.mxu0 0
    %2120 = vmatprep.subr.bf16.mxu0 0
    %2121 = vmatpush1.bf16.msra.mxu0 0
    %2122 = vmatprep.subr.bf16.mxu0 0
    %2123 = vmatpush1.bf16.msra.mxu0 0
    %2124 = vmatprep.subr.bf16.mxu0 0
    %2125 = vmatpush1.bf16.msra.mxu0 0
    %2126 = vmatprep.subr.bf16.mxu0 0
    %2127 = vmatpush1.bf16.msra.mxu0 0
    %2128 = vmatprep.subr.bf16.mxu0 0
    %2129 = vmatpush1.bf16.msra.mxu0 0
    %2130 = vmatprep.subr.bf16.mxu0 0
    %2131 = vmatpush1.bf16.msra.mxu0 0
    %2132 = vmatprep.mubr.bf16.mxu0 0
    %2133 = vmatmul.mubr.bf16.gmra.mrb[0].mxu0 %v2088
    %v2134 = vpop.f32.mrb[0].mxu0
    %v2135 = vadd.f32 %v2074, %v2134
    %v2136 = vpop.f32.mrb[0].mxu0
    %v2137 = vadd.f32 %v2074, %v2136
    %v2138 = vpop.f32.mrb[0].mxu0
    %v2139 = vadd.f32 %v2079, %v2138
    %v2140 = vpop.f32.mrb[0].mxu0
    %v2141 = vadd.f32 %v2079, %v2140
    %2142 = vdwg.mxu0
    %v2143 = vsub.f32 0.0, %v2135
    %v2144 = vsub.f32 0.0, %v2137
    %v2145 = vsub.f32 0.0, %v2139
    %v2146 = vsub.f32 0.0, %v2141
    %v2147 = vmul.f32 %v2143, 1.442695
    %v2148 = vpow.pop %v2147
    %v2149 = vmul.f32 %v2144, 1.442695
    %v2150 = vpow.pop %v2149
    %v2151 = vmul.f32 %v2145, 1.442695
    %v2152 = vpow.pop %v2151
    %v2153 = vmul.f32 %v2146, 1.442695
    %v2154 = vpow.pop %v2153
    %v2155 = vadd.f32 %v2148, 1.0
    %v2156 = vadd.f32 %v2150, 1.0
    %v2157 = vadd.f32 %v2152, 1.0
    %v2158 = vadd.f32 %v2154, 1.0
    %v2159 = vrcp.pop %v2155
    %v2160 = vrcp.pop %v2156
    %v2161 = vrcp.pop %v2157
    %v2162 = vrcp.pop %v2158
    %v2163 = vld [vmem:[%s9] sm:$0xff]
    %v2164 = vld [vmem:[%s9 + $0x8] sm:$0x1]
    %2166 = vset.pattern.permute.xlu0 0
    %2167 = vperm.xlu0 %2166, %v2163
    %v2168 = vpop.permute.xlu0 %2167
    %2171 = vset.pattern.permute.xlu0 0
    %2172 = vperm.xlu0 %2171, %v2164
    %v2173 = vpop.permute.xlu0 %2172
    %v2175 = vmul.f32 %v2159, %v2168
    %v2176 = vmul.f32 %v2160, %v2168
    %v2177 = vmul.f32 %v2161, %v2173
    %v2178 = vmul.f32 %v2162, %v2173
    %vm2179 = vcmask 1040384
    %v2180 = vsel %vm2179, %v2177, 0.0
    %v2181 = vadd.f32 %v2175, %v2180
    %v2182 = vrot.slane %v2181, 4
    %v2183 = vadd.f32 %v2181, %v2182
    %v2184 = vrot.slane %v2183, 2
    %v2185 = vadd.f32 %v2183, %v2184
    %v2186 = vrot.slane %v2185, 1
    %v2187 = vadd.f32 %v2185, %v2186
    %v2188 = vsel %vm2179, %v2178, 0.0
    %v2189 = vadd.f32 %v2176, %v2188
    %v2190 = vrot.slane %v2189, 4
    %v2191 = vadd.f32 %v2189, %v2190
    %v2192 = vrot.slane %v2191, 2
    %v2193 = vadd.f32 %v2191, %v2192
    %v2194 = vrot.slane %v2193, 1
    %v2195 = vadd.f32 %v2193, %v2194
    %v2196 = vld [vmem:[#allocation2] sm:$0x1]
    %2198 = vset.pattern.permute.xlu0 0
    %2199 = vperm.xlu0 %2198, %v2196
    %v2200 = vpop.permute.xlu0 %2199
    %v2202 = vlaneseq
    %v2203 = vshrl.u32 %v2202, 7
    %v2204 = vsub.s32 0, %v2203
    %v2205 = vrot.slane %v2200, %v2204
    %v2206 = vadd.f32 %v2187, %v2205
    %v2207 = vadd.f32 %v2195, %v2205
    %v2210 = vcombine.low %v2206, %v2207
    %v2212 = vunpack.c.l.s4 1966171168
    %v2213 = vunpack.c.0.s8 %v2212
    %v2214 = vlaneseq
    %v2215 = vshrl.u32 %v2214, 7
    %v2216 = vsub.s32 %v2213, %v2215
    %v2217 = vrot.slane %v2210, %v2216
    %v2219 = vunpack.c.l.s4 1966171168
    %v2220 = vunpack.c.0.s8 %v2219
    %v2221 = vlaneseq
    %v2222 = vshrl.u32 %v2221, 7
    %v2223 = vsub.s32 %v2220, %v2222
    %v2224 = vrot.slane %v2217, %v2223
    %v2226 = vlaneseq
    %vm2227 = vcmp.ge.s32.totalorder %v2226, 0
    %vm2228 = vcmp.lt.s32.totalorder %v2226, 256
    %vm2229 = vmand %vm2227, %vm2228
    %2230 = vst.msk [vmem:[%s11] sm:$0x3] %vm2229, %v2224
    // Predicated region
    $region54: #{waternet_forward.1} parent=1 // pred_check
      _
    $region55: #{waternet_forward.1} parent=1 // pred_check_branch
      %2232 = sbr.rel (0) target = $region57
    $region56: #{waternet_forward.1} parent=1 // pred_region
      _
    $region57: #{waternet_forward.1} parent=1 // pred_fallthru
      _
    // Predicated region
    $region58: #{waternet_forward.1} parent=1 // pred_check
      _
    $region59: #{waternet_forward.1} parent=1 // pred_check_branch
      %2234 = sbr.rel (0) target = $region61
    $region60: #{waternet_forward.1} parent=1 // pred_region
      _
    $region61: #{waternet_forward.1} parent=1 // pred_fallthru
      _
    %2235 = vsyncpa [#allocation4], 1
    %2236 = vsyncpa [#allocation6], 1

</llo_original>
